<compile_context>
chip_gen: v6e
topology: v6e:2x2x1
jax: 0.10.0
libtpu: 0.0.40
codegen_flags: <defaults>
</compile_context>

<pallas_src>
import functools

import jax
import jax.numpy as jnp
import numpy as np
from jax.experimental import pallas as pl
from jax.experimental.pallas import tpu as pltpu

_K_FORI_THRESHOLD = 16  # switch the neighbour-slot loops to lax.fori_loop


def _query_group_kernel(q_ref, qc_ref, xyz_ref, data_ref, out_ref,
                        cntc_ref, cntl_ref, d0_ref, *, radius2, K):
    """One (batch, query-tile, point-tile) grid step.

    q_ref    : (1, TM, 3)   query coords, queries on sublanes (distance math)
    qc_ref   : (1, 3, TM)   query coords, queries on lanes (centering)
    xyz_ref  : (1, 3, TN)   source point coords (always f32)
    data_ref : (1, C, TN)   [xyz ; feature] channels (select dtype)
    out_ref  : (1, K, C, TM) output block; resident across the point axis and
               used directly as the per-slot accumulator
    cntc_ref : (TM, 1) carried per-query hit count (sublane layout, rank offset)
    cntl_ref : (1, TM) carried per-query hit count (lane layout, final blend)
    d0_ref   : (C, 1)  point-0 data (fallback when a query has no hit at all)
    """
    ni = pl.program_id(2)
    last = pl.num_programs(2) - 1

    # ---- init carried state on the first point tile ----------------------
    @pl.when(ni == 0)
    def _init():
        out_ref[...] = jnp.zeros_like(out_ref)
        cntc_ref[...] = jnp.zeros_like(cntc_ref)
        cntl_ref[...] = jnp.zeros_like(cntl_ref)
        d0_ref[...] = data_ref[0, :, 0:1].astype(jnp.float32)

    q = q_ref[0].astype(jnp.float32)        # (TM, 3)
    xyz = xyz_ref[0].astype(jnp.float32)    # (3, TN)
    data = data_ref[0]                      # (C, TN)  select dtype
    TM = q.shape[0]
    TN = xyz.shape[1]

    # ---- squared distances: difference-then-square (matches the reference
    #      formulation, robust to world-frame coordinates; VPU only) --------
    dist2 = jnp.zeros((TM, TN), jnp.float32)
    for d in range(3):
        diff = q[:, d:d + 1] - xyz[d:d + 1, :]
        dist2 = dist2 + diff * diff
    mask = dist2 < radius2
    mask_f = mask.astype(jnp.float32)

    # ---- inclusive prefix sum along the point (lane) axis: Hillis-Steele
    #      scan built from XLU rolls; no (TN, TN) temporary ------------------
    lane = jax.lax.broadcasted_iota(jnp.int32, (TM, TN), 1)
    cum = mask_f
    shift = 1
    while shift < TN:
        cum = cum + jnp.where(lane >= shift, pltpu.roll(cum, shift, 1), 0.0)
        shift *= 2
    # (lane iota is only needed for the scan masks; nothing below keeps a
    #  second full-width int32 array alive.)

    # ---- global 0-based rank of each hit among its query's hits; -1 = miss
    c_prev = cntc_ref[...]                                       # (TM, 1)
    hit_rank = jnp.where(mask, c_prev + cum - 1.0, -1.0)         # (TM, TN)

    # update carried hit counts (both layouts; the lane copy via a tiny matmul)
    cntc_ref[...] = c_prev + cum[:, TN - 1:TN]
    cntl_ref[...] = cntl_ref[...] + jax.lax.dot_general(
        jnp.ones((1, TN), jnp.float32), mask_f,
        (((1,), (1,)), ((), ())), preferred_element_type=jnp.float32)

    # ---- one-hot gather per neighbour slot (MXU), accumulated into out_ref.
    #      Across N tiles at most one tile contributes per (slot, query), so
    #      the accumulation is exact in any dtype. --------------------------
    def slot_update(k, k_f):
        sel = jnp.where(hit_rank == k_f, 1.0, 0.0).astype(data.dtype)
        g = jax.lax.dot_general(data, sel, (((1,), (1,)), ((), ())),
                                preferred_element_type=jnp.float32)  # (C, TM)
        out_ref[0, k] = (out_ref[0, k].astype(jnp.float32)
                         + g).astype(out_ref.dtype)

    if K >= _K_FORI_THRESHOLD:
        def body(k, carry):
            slot_update(k, k.astype(jnp.float32))
            return carry
        jax.lax.fori_loop(0, K, body, 0, unroll=4)
    else:
        for k in range(K):
            slot_update(k, float(k))

    # ---- finalize on the last point tile: centering + ball-query fallback -
    @pl.when(ni == last)
    def _finalize():
        C = data.shape[0]
        qc = qc_ref[0].astype(jnp.float32)                       # (3, TM)
        # zero-padded centering offsets built in-kernel (no extra HBM stream)
        row = jax.lax.broadcasted_iota(jnp.int32, (C, TM), 0)
        center = jnp.zeros((C, TM), jnp.float32)
        for d in range(3):
            center = center + jnp.where(row == d, qc[d:d + 1, :], 0.0)

        cnt = cntl_ref[...]                                      # (1, TM)
        acc0 = out_ref[0, 0].astype(jnp.float32)
        d0 = jnp.broadcast_to(d0_ref[...], (C, TM))
        # slot 0 = first in-range point, or point 0 if the query had no hit;
        # it is also the fallback for every unfilled slot k >= 1.
        g0 = jnp.where(cnt > 0.0, acc0, d0) - center
        out_ref[0, 0] = g0.astype(out_ref.dtype)

        def blend(k, k_f):
            gk = out_ref[0, k].astype(jnp.float32) - center
            out_ref[0, k] = jnp.where(cnt > k_f, gk, g0).astype(out_ref.dtype)

        if K >= _K_FORI_THRESHOLD:
            def fbody(k, carry):
                blend(k, k.astype(jnp.float32))
                return carry
            jax.lax.fori_loop(1, K, fbody, 0, unroll=4)
        else:
            for k in range(1, K):
                blend(k, float(k))


def _pick_tiles(B, M, N, C, K):
    """N-, K- and megacore-aware tile selection (128-multiple or full dim)."""
    def div_tile(total, cands):
        for t in cands:
            if t <= total and total % t == 0:
                return t
        return None

    TM = div_tile(M, (512, 256, 128)) or M
    # v7x megacore: prefer >= 2 "parallel" grid tiles (2 TensorCores).
    while B * (M // TM) < 2 and TM % 256 == 0:
        TM //= 2
    # keep the resident output block (K, C, TM) (+ its double buffer) modest.
    while TM % 256 == 0 and 3 * K * C * TM * 4 > 24 * 1024 * 1024:
        TM //= 2

    # Point tile: bound the ~5 live (TM, TN) f32 temporaries (dist/mask/scan/
    # rank/one-hot) to ~10 MiB so the working set fits v7x's 64 MiB VMEM.
    budget_elems = (10 * 1024 * 1024) // (5 * 4)
    tn_cap = max(128, budget_elems // TM)
    TN = N
    if N > tn_cap:
        TN = div_tile(N, tuple(t for t in (4096, 2048, 1024, 512, 256, 128)
                               if t <= tn_cap)) or N
    return TM, TN


def _vmem_limit_bytes():
    phys = 128 * 1024 * 1024
    try:
        phys = int(pltpu.get_tpu_info().vmem_capacity_bytes)
    except Exception:
        pass
    # ~70% of physical VMEM: ~44 MiB on v7x (64 MiB), ~90 MiB on v5e/v6e (128).
    return max(32 * 1024 * 1024, (phys * 7) // 10)


def query_grouper(new_xyz, xyz, feature, use_xyz, *, radius, num_neighbours,
                  select_dtype=None, tile_m=None, tile_n=None):
    """Forward pass of QueryGrouper. Returns (group_feature, group_xyz).

    select_dtype: dtype of the one-hot gather matmuls.  Defaults to the input
      dtype (exact).  Pass jnp.bfloat16 for the bf16 MXU fast path (gathered
      values are bf16-rounded; neighbour *selection* is unaffected since the
      distance test always runs in f32).
    """
    assert radius > 0.0 and num_neighbours > 0
    B, _, M = new_xyz.shape
    _, _, N = xyz.shape
    K = num_neighbours

    if feature is not None:
        data = jnp.concatenate([xyz, feature], axis=1)           # (B, 3+Cf, N)
    else:
        data = xyz
    C = data.shape[1]
    out_dtype = data.dtype
    if select_dtype is None:
        select_dtype = data.dtype
    data = data.astype(select_dtype)

    new_xyz_t = jnp.transpose(new_xyz, (0, 2, 1)).astype(jnp.float32)  # (B,M,3)
    new_xyz_f = new_xyz.astype(jnp.float32)                            # (B,3,M)
    xyz_f = xyz.astype(jnp.float32)                                    # (B,3,N)

    TM, TN = _pick_tiles(B, M, N, C, K)
    if tile_m is not None:
        TM = tile_m
    if tile_n is not None:
        TN = tile_n
    assert M % TM == 0 and N % TN == 0, (M, TM, N, TN)

    grid = (B, M // TM, N // TN)
    kernel = functools.partial(_query_group_kernel,
                               radius2=float(radius) ** 2, K=K)

    out = pl.pallas_call(
        kernel,
        out_shape=jax.ShapeDtypeStruct((B, K, C, M), out_dtype),
        grid_spec=pltpu.PrefetchScalarGridSpec(
            num_scalar_prefetch=0,
            grid=grid,
            in_specs=[
                pl.BlockSpec((1, TM, 3), lambda b, mi, ni: (b, mi, 0)),
                pl.BlockSpec((1, 3, TM), lambda b, mi, ni: (b, 0, mi)),
                pl.BlockSpec((1, 3, TN), lambda b, mi, ni: (b, 0, ni)),
                pl.BlockSpec((1, C, TN), lambda b, mi, ni: (b, 0, ni)),
            ],
            out_specs=pl.BlockSpec((1, K, C, TM),
                                   lambda b, mi, ni: (b, 0, 0, mi)),
            scratch_shapes=[
                pltpu.VMEM((TM, 1), jnp.float32),   # running count (sublane)
                pltpu.VMEM((1, TM), jnp.float32),   # running count (lane)
                pltpu.VMEM((C, 1), jnp.float32),    # point-0 fallback data
            ],
        ),
        compiler_params=pltpu.CompilerParams(
            dimension_semantics=("parallel", "parallel", "arbitrary"),
            vmem_limit_bytes=_vmem_limit_bytes()),
    )(new_xyz_t, new_xyz_f, xyz_f, data)

    # Kernel emits an M-lane-dense (B, K, C, M) layout; restore (B, C, M, K),
    # slicing channels BEFORE the transpose so unused bytes are not moved.
    if feature is not None:
        if use_xyz:
            grouped = jnp.transpose(out, (0, 2, 3, 1))            # (B, C, M, K)
            group_feature = grouped
            group_xyz = grouped[:, :3]
        else:
            group_xyz = jnp.transpose(out[:, :, :3, :], (0, 2, 3, 1))
            group_feature = jnp.transpose(out[:, :, 3:, :], (0, 2, 3, 1))
    else:
        group_xyz = jnp.transpose(out, (0, 2, 3, 1))
        group_feature = group_xyz
    return group_feature, group_xyz


def _reference(new_xyz, xyz, feature, use_xyz, radius, K):
    """Numpy reference mirroring PointNet++ ball_query / group_points."""
    new_xyz = np.asarray(new_xyz, np.float32)
    xyz = np.asarray(xyz, np.float32)
    feature = None if feature is None else np.asarray(feature, np.float32)
    B, _, M = new_xyz.shape
    N = xyz.shape[2]
    r2 = np.float32(radius * radius)
    idx = np.zeros((B, M, K), np.int64)
    for b in range(B):
        for m in range(M):
            d2 = np.sum((xyz[b] - new_xyz[b, :, m:m + 1]) ** 2,
                        axis=0, dtype=np.float32)
            hits = np.nonzero(d2 < r2)[0]
            if hits.size:
                idx[b, m, :] = hits[0]
                take = hits[:K]
                idx[b, m, :take.size] = take

    def group(pts):
        return np.stack([pts[b][:, idx[b]] for b in range(B)], axis=0)

    gxyz = group(xyz) - new_xyz[:, :, :, None]
    if feature is not None:
        gfeat = group(feature)
        if use_xyz:
            gfeat = np.concatenate([gxyz, gfeat], axis=1)
    else:
        gfeat = gxyz
    return gfeat, gxyz


if __name__ == "__main__":
    # ---- small shapes: single point tile, static-K loop -------------------
    B, N, M, Cf, K = 2, 16, 8, 4, 4
    radius = 0.25
    k1, k2, k3 = jax.random.split(jax.random.PRNGKey(0), 3)
    xyz = jax.random.uniform(k1, (B, 3, N), dtype=jnp.float32)
    new_xyz = jax.random.uniform(k2, (B, 3, M), dtype=jnp.float32)
    feature = jax.random.normal(k3, (B, Cf, N), dtype=jnp.float32)

    ref_feat, ref_xyz = _reference(new_xyz, xyz, feature, True, radius, K)

    # exact (input-dtype, f32) selection path
    gf, gx = query_grouper(new_xyz, xyz, feature, use_xyz=True,
                           radius=radius, num_neighbours=K)
    jax.block_until_ready((gf, gx))
    assert gf.shape == (B, 3 + Cf, M, K) and gx.shape == (B, 3, M, K)
    np.testing.assert_allclose(np.asarray(gx), ref_xyz, rtol=1e-5, atol=1e-5)
    np.testing.assert_allclose(np.asarray(gf), ref_feat, rtol=1e-5, atol=1e-5)

    # bf16 selection fast path (review item 6): indices identical, values
    # bf16-rounded.
    gf16, gx16 = query_grouper(new_xyz, xyz, feature, use_xyz=True,
                               radius=radius, num_neighbours=K,
                               select_dtype=jnp.bfloat16)
    jax.block_until_ready((gf16, gx16))
    np.testing.assert_allclose(np.asarray(gx16), ref_xyz, rtol=2e-2, atol=2e-2)
    np.testing.assert_allclose(np.asarray(gf16), ref_feat, rtol=2e-2, atol=2e-2)

    # use_xyz=False (slice-before-transpose path) and feature=None paths.
    gf_no, _ = query_grouper(new_xyz, xyz, feature, use_xyz=False,
                             radius=radius, num_neighbours=K)
    ref_feat_no, _ = _reference(new_xyz, xyz, feature, False, radius, K)
    jax.block_until_ready(gf_no)
    np.testing.assert_allclose(np.asarray(gf_no), ref_feat_no,
                               rtol=1e-5, atol=1e-5)

    gf_nf, gx_nf = query_grouper(new_xyz, xyz, None, use_xyz=False,
                                 radius=radius, num_neighbours=K)
    jax.block_until_ready((gf_nf, gx_nf))
    np.testing.assert_allclose(np.asarray(gf_nf), ref_xyz, rtol=1e-5, atol=1e-5)

    # ---- multi point-tile carry + fori-K path (still small) ---------------
    B2, N2, M2, Cf2, K2 = 1, 256, 128, 4, 16
    radius2 = 0.35
    j1, j2, j3 = jax.random.split(jax.random.PRNGKey(1), 3)
    xyz2 = jax.random.uniform(j1, (B2, 3, N2), dtype=jnp.float32)
    new_xyz2 = jax.random.uniform(j2, (B2, 3, M2), dtype=jnp.float32)
    feature2 = jax.random.normal(j3, (B2, Cf2, N2), dtype=jnp.float32)
    gf2, gx2 = query_grouper(new_xyz2, xyz2, feature2, use_xyz=True,
                             radius=radius2, num_neighbours=K2, tile_n=128)
    jax.block_until_ready((gf2, gx2))
    rf2, rx2 = _reference(new_xyz2, xyz2, feature2, True, radius2, K2)
    np.testing.assert_allclose(np.asarray(gx2), rx2, rtol=1e-5, atol=1e-5)
    np.testing.assert_allclose(np.asarray(gf2), rf2, rtol=1e-5, atol=1e-5)

    print("KERNEL_OK")
</pallas_src>

<mosaic_0001>
module attributes {stable_mosaic.version = 11 : i64} {
  func.func @_query_group_kernel(%arg0: i32, %arg1: i32, %arg2: i32, %arg3: memref<1x8x3xf32, #tpu.memory_space<vmem>>, %arg4: memref<1x3x8xf32, #tpu.memory_space<vmem>>, %arg5: memref<1x3x16xf32, #tpu.memory_space<vmem>>, %arg6: memref<1x7x16xf32, #tpu.memory_space<vmem>>, %arg7: memref<1x4x7x8xf32, #tpu.memory_space<vmem>>, %arg8: memref<8x1xf32, #tpu.memory_space<vmem>>, %arg9: memref<1x8xf32, #tpu.memory_space<vmem>>, %arg10: memref<7x1xf32, #tpu.memory_space<vmem>>) attributes {dimension_semantics = [#tpu.dimension_semantics<parallel>, #tpu.dimension_semantics<parallel>, #tpu.dimension_semantics<arbitrary>], iteration_bounds = array<i64: 2, 1, 1>, scalar_prefetch = 0 : i64, scratch_operands = 3 : i64, tpu.core_type = #tpu.core_type<tc>, window_params = [{transform_indices = @transform_0, window_bounds = array<i64: 1, 8, 3>}, {transform_indices = @transform_1, window_bounds = array<i64: 1, 3, 8>}, {transform_indices = @transform_2, window_bounds = array<i64: 1, 3, 16>}, {transform_indices = @transform_3, window_bounds = array<i64: 1, 7, 16>}, {transform_indices = @transform_4, window_bounds = array<i64: 1, 4, 7, 8>}]} {
    %c0_i32 = arith.constant 0 : i32
    %0 = arith.cmpi eq, %arg2, %c0_i32 : i32
    %1 = arith.extui %0 : i1 to i32
    %c0_i32_0 = arith.constant 0 : i32
    %2 = arith.cmpi ne, %1, %c0_i32_0 : i32
    scf.if %2 {
      %cst_77 = arith.constant 0.000000e+00 : f32
      %126 = vector.broadcast %cst_77 : f32 to vector<1x4x7x8xf32>
      %c0_78 = arith.constant 0 : index
      %c0_79 = arith.constant 0 : index
      %c0_80 = arith.constant 0 : index
      %c0_81 = arith.constant 0 : index
      %127 = vector.load %arg7[%c0_78, %c0_79, %c0_80, %c0_81] : memref<1x4x7x8xf32, #tpu.memory_space<vmem>>, vector<1x4x7x8xf32>
      tpu.vector_store %arg7[%c0_78, %c0_79, %c0_80, %c0_81], %126 {strides = array<i32>} : memref<1x4x7x8xf32, #tpu.memory_space<vmem>>, vector<1x4x7x8xf32>,
      %cst_82 = arith.constant 0.000000e+00 : f32
      %128 = vector.broadcast %cst_82 : f32 to vector<8x1xf32>
      %c0_83 = arith.constant 0 : index
      %c0_84 = arith.constant 0 : index
      %129 = vector.load %arg8[%c0_83, %c0_84] : memref<8x1xf32, #tpu.memory_space<vmem>>, vector<8x1xf32>
      tpu.vector_store %arg8[%c0_83, %c0_84], %128 {strides = array<i32>} : memref<8x1xf32, #tpu.memory_space<vmem>>, vector<8x1xf32>,
      %cst_85 = arith.constant 0.000000e+00 : f32
      %130 = vector.broadcast %cst_85 : f32 to vector<1x8xf32>
      %c0_86 = arith.constant 0 : index
      %c0_87 = arith.constant 0 : index
      %131 = vector.load %arg9[%c0_86, %c0_87] : memref<1x8xf32, #tpu.memory_space<vmem>>, vector<1x8xf32>
      tpu.vector_store %arg9[%c0_86, %c0_87], %130 {strides = array<i32>} : memref<1x8xf32, #tpu.memory_space<vmem>>, vector<1x8xf32>,
      %c0_88 = arith.constant 0 : index
      %c0_89 = arith.constant 0 : index
      %c0_90 = arith.constant 0 : index
      %132 = vector.load %arg6[%c0_88, %c0_89, %c0_90] : memref<1x7x16xf32, #tpu.memory_space<vmem>>, vector<1x7x1xf32>
      %133 = vector.shape_cast %132 : vector<1x7x1xf32> to vector<7x1xf32>
      %c0_91 = arith.constant 0 : index
      %c0_92 = arith.constant 0 : index
      %134 = vector.load %arg10[%c0_91, %c0_92] : memref<7x1xf32, #tpu.memory_space<vmem>>, vector<7x1xf32>
      tpu.vector_store %arg10[%c0_91, %c0_92], %133 {strides = array<i32>} : memref<7x1xf32, #tpu.memory_space<vmem>>, vector<7x1xf32>,
    } else {
    }
    %c0 = arith.constant 0 : index
    %c0_1 = arith.constant 0 : index
    %c0_2 = arith.constant 0 : index
    %3 = vector.load %arg3[%c0, %c0_1, %c0_2] : memref<1x8x3xf32, #tpu.memory_space<vmem>>, vector<1x8x3xf32>
    %4 = vector.shape_cast %3 : vector<1x8x3xf32> to vector<8x3xf32>
    %c0_3 = arith.constant 0 : index
    %c0_4 = arith.constant 0 : index
    %c0_5 = arith.constant 0 : index
    %5 = vector.load %arg5[%c0_3, %c0_4, %c0_5] : memref<1x3x16xf32, #tpu.memory_space<vmem>>, vector<1x3x16xf32>
    %6 = vector.shape_cast %5 : vector<1x3x16xf32> to vector<3x16xf32>
    %c0_6 = arith.constant 0 : index
    %c0_7 = arith.constant 0 : index
    %c0_8 = arith.constant 0 : index
    %7 = vector.load %arg6[%c0_6, %c0_7, %c0_8] : memref<1x7x16xf32, #tpu.memory_space<vmem>>, vector<1x7x16xf32>
    %8 = vector.shape_cast %7 : vector<1x7x16xf32> to vector<7x16xf32>
    %cst = arith.constant 0.000000e+00 : f32
    %9 = vector.broadcast %cst : f32 to vector<8x16xf32>
    %10 = vector.extract_strided_slice %4 {offsets = [0, 0], sizes = [8, 1], strides = [1, 1]} : vector<8x3xf32> to vector<8x1xf32>
    %11 = vector.extract_strided_slice %6 {offsets = [0, 0], sizes = [1, 16], strides = [1, 1]} : vector<3x16xf32> to vector<1x16xf32>
    %12 = vector.broadcast %10 : vector<8x1xf32> to vector<8x16xf32>
    %13 = vector.broadcast %11 : vector<1x16xf32> to vector<8x16xf32>
    %14 = arith.subf %12, %13 : vector<8x16xf32>
    %15 = arith.mulf %14, %14 : vector<8x16xf32>
    %16 = arith.addf %9, %15 : vector<8x16xf32>
    %17 = vector.extract_strided_slice %4 {offsets = [0, 1], sizes = [8, 1], strides = [1, 1]} : vector<8x3xf32> to vector<8x1xf32>
    %18 = vector.extract_strided_slice %6 {offsets = [1, 0], sizes = [1, 16], strides = [1, 1]} : vector<3x16xf32> to vector<1x16xf32>
    %19 = vector.broadcast %17 : vector<8x1xf32> to vector<8x16xf32>
    %20 = vector.broadcast %18 : vector<1x16xf32> to vector<8x16xf32>
    %21 = arith.subf %19, %20 : vector<8x16xf32>
    %22 = arith.mulf %21, %21 : vector<8x16xf32>
    %23 = arith.addf %16, %22 : vector<8x16xf32>
    %24 = vector.extract_strided_slice %4 {offsets = [0, 2], sizes = [8, 1], strides = [1, 1]} : vector<8x3xf32> to vector<8x1xf32>
    %25 = vector.extract_strided_slice %6 {offsets = [2, 0], sizes = [1, 16], strides = [1, 1]} : vector<3x16xf32> to vector<1x16xf32>
    %26 = vector.broadcast %24 : vector<8x1xf32> to vector<8x16xf32>
    %27 = vector.broadcast %25 : vector<1x16xf32> to vector<8x16xf32>
    %28 = arith.subf %26, %27 : vector<8x16xf32>
    %29 = arith.mulf %28, %28 : vector<8x16xf32>
    %30 = arith.addf %23, %29 : vector<8x16xf32>
    %cst_9 = arith.constant 6.250000e-02 : f32
    %31 = vector.broadcast %cst_9 : f32 to vector<8x16xf32>
    %32 = arith.cmpf olt, %30, %31 : vector<8x16xf32>
    %33 = arith.extui %32 : vector<8x16xi1> to vector<8x16xi32>
    %34 = arith.sitofp %33 : vector<8x16xi32> to vector<8x16xf32>
    %35 = tpu.iota {dimensions = array<i32: 1>} : vector<8x16xi32>
    %c1_i32 = arith.constant 1 : i32
    %36 = vector.broadcast %c1_i32 : i32 to vector<8x16xi32>
    %37 = arith.cmpi sge, %35, %36 : vector<8x16xi32>
    %c1_i32_10 = arith.constant 1 : i32
    %38 = tpu.dynamic_rotate %34 by %c1_i32_10 dim 1 : vector<8x16xf32>, i32 -> vector<8x16xf32>
    %cst_11 = arith.constant 0.000000e+00 : f32
    %39 = vector.broadcast %cst_11 : f32 to vector<8x16xf32>
    %40 = arith.select %37, %38, %39 : vector<8x16xi1>, vector<8x16xf32>
    %41 = arith.addf %34, %40 : vector<8x16xf32>
    %c2_i32 = arith.constant 2 : i32
    %42 = vector.broadcast %c2_i32 : i32 to vector<8x16xi32>
    %43 = arith.cmpi sge, %35, %42 : vector<8x16xi32>
    %c2_i32_12 = arith.constant 2 : i32
    %44 = tpu.dynamic_rotate %41 by %c2_i32_12 dim 1 : vector<8x16xf32>, i32 -> vector<8x16xf32>
    %cst_13 = arith.constant 0.000000e+00 : f32
    %45 = vector.broadcast %cst_13 : f32 to vector<8x16xf32>
    %46 = arith.select %43, %44, %45 : vector<8x16xi1>, vector<8x16xf32>
    %47 = arith.addf %41, %46 : vector<8x16xf32>
    %c4_i32 = arith.constant 4 : i32
    %48 = vector.broadcast %c4_i32 : i32 to vector<8x16xi32>
    %49 = arith.cmpi sge, %35, %48 : vector<8x16xi32>
    %c4_i32_14 = arith.constant 4 : i32
    %50 = tpu.dynamic_rotate %47 by %c4_i32_14 dim 1 : vector<8x16xf32>, i32 -> vector<8x16xf32>
    %cst_15 = arith.constant 0.000000e+00 : f32
    %51 = vector.broadcast %cst_15 : f32 to vector<8x16xf32>
    %52 = arith.select %49, %50, %51 : vector<8x16xi1>, vector<8x16xf32>
    %53 = arith.addf %47, %52 : vector<8x16xf32>
    %c8_i32 = arith.constant 8 : i32
    %54 = vector.broadcast %c8_i32 : i32 to vector<8x16xi32>
    %55 = arith.cmpi sge, %35, %54 : vector<8x16xi32>
    %c8_i32_16 = arith.constant 8 : i32
    %56 = tpu.dynamic_rotate %53 by %c8_i32_16 dim 1 : vector<8x16xf32>, i32 -> vector<8x16xf32>
    %cst_17 = arith.constant 0.000000e+00 : f32
    %57 = vector.broadcast %cst_17 : f32 to vector<8x16xf32>
    %58 = arith.select %55, %56, %57 : vector<8x16xi1>, vector<8x16xf32>
    %59 = arith.addf %53, %58 : vector<8x16xf32>
    %c0_18 = arith.constant 0 : index
    %c0_19 = arith.constant 0 : index
    %60 = vector.load %arg8[%c0_18, %c0_19] : memref<8x1xf32, #tpu.memory_space<vmem>>, vector<8x1xf32>
    %61 = vector.broadcast %60 : vector<8x1xf32> to vector<8x16xf32>
    %62 = arith.addf %61, %59 : vector<8x16xf32>
    %cst_20 = arith.constant 1.000000e+00 : f32
    %63 = vector.broadcast %cst_20 : f32 to vector<8x16xf32>
    %64 = arith.subf %62, %63 : vector<8x16xf32>
    %cst_21 = arith.constant -1.000000e+00 : f32
    %65 = vector.broadcast %cst_21 : f32 to vector<8x16xf32>
    %66 = arith.select %32, %64, %65 : vector<8x16xi1>, vector<8x16xf32>
    %67 = vector.extract_strided_slice %59 {offsets = [0, 15], sizes = [8, 1], strides = [1, 1]} : vector<8x16xf32> to vector<8x1xf32>
    %68 = arith.addf %60, %67 : vector<8x1xf32>
    %c0_22 = arith.constant 0 : index
    %c0_23 = arith.constant 0 : index
    %69 = vector.load %arg8[%c0_22, %c0_23] : memref<8x1xf32, #tpu.memory_space<vmem>>, vector<8x1xf32>
    tpu.vector_store %arg8[%c0_22, %c0_23], %68 {strides = array<i32>} : memref<8x1xf32, #tpu.memory_space<vmem>>, vector<8x1xf32>,
    %c0_24 = arith.constant 0 : index
    %c0_25 = arith.constant 0 : index
    %70 = vector.load %arg9[%c0_24, %c0_25] : memref<1x8xf32, #tpu.memory_space<vmem>>, vector<1x8xf32>
    %cst_26 = arith.constant 1.000000e+00 : f32
    %71 = vector.broadcast %cst_26 : f32 to vector<1x16xf32>
    %cst_27 = arith.constant dense<0.000000e+00> : vector<1x8xf32>
    %72 = tpu.matmul %71, %34, %cst_27 {dimension_numbers = #tpu.dot_dimension_numbers<[1], [1], [0], [0], [0, 0, 1, 0], [], []>} : vector<1x16xf32>, vector<8x16xf32>, vector<1x8xf32> -> vector<1x8xf32>
    %73 = arith.addf %70, %72 : vector<1x8xf32>
    %c0_28 = arith.constant 0 : index
    %c0_29 = arith.constant 0 : index
    %74 = vector.load %arg9[%c0_28, %c0_29] : memref<1x8xf32, #tpu.memory_space<vmem>>, vector<1x8xf32>
    tpu.vector_store %arg9[%c0_28, %c0_29], %73 {strides = array<i32>} : memref<1x8xf32, #tpu.memory_space<vmem>>, vector<1x8xf32>,
    %cst_30 = arith.constant 0.000000e+00 : f32
    %75 = vector.broadcast %cst_30 : f32 to vector<8x16xf32>
    %76 = arith.cmpf oeq, %66, %75 : vector<8x16xf32>
    %cst_31 = arith.constant 1.000000e+00 : f32
    %cst_32 = arith.constant 0.000000e+00 : f32
    %77 = vector.broadcast %cst_31 : f32 to vector<8x16xf32>
    %78 = vector.broadcast %cst_32 : f32 to vector<8x16xf32>
    %79 = arith.select %76, %77, %78 : vector<8x16xi1>, vector<8x16xf32>
    %cst_33 = arith.constant dense<0.000000e+00> : vector<7x8xf32>
    %80 = tpu.matmul %8, %79, %cst_33 {dimension_numbers = #tpu.dot_dimension_numbers<[1], [1], [0], [0], [0, 0, 1, 0], [], []>} : vector<7x16xf32>, vector<8x16xf32>, vector<7x8xf32> -> vector<7x8xf32>
    %c0_34 = arith.constant 0 : index
    %c0_35 = arith.constant 0 : index
    %c0_36 = arith.constant 0 : index
    %c0_37 = arith.constant 0 : index
    %81 = vector.load %arg7[%c0_34, %c0_35, %c0_36, %c0_37] : memref<1x4x7x8xf32, #tpu.memory_space<vmem>>, vector<1x1x7x8xf32>
    %82 = vector.shape_cast %81 : vector<1x1x7x8xf32> to vector<7x8xf32>
    %83 = arith.addf %82, %80 : vector<7x8xf32>
    %c0_38 = arith.constant 0 : index
    %c0_39 = arith.constant 0 : index
    %c0_40 = arith.constant 0 : index
    %c0_41 = arith.constant 0 : index
    %84 = vector.load %arg7[%c0_38, %c0_39, %c0_40, %c0_41] : memref<1x4x7x8xf32, #tpu.memory_space<vmem>>, vector<1x1x7x8xf32>
    %85 = vector.shape_cast %84 : vector<1x1x7x8xf32> to vector<7x8xf32>
    %86 = vector.shape_cast %83 : vector<7x8xf32> to vector<1x1x7x8xf32>
    tpu.vector_store %arg7[%c0_38, %c0_39, %c0_40, %c0_41], %86 {strides = array<i32>} : memref<1x4x7x8xf32, #tpu.memory_space<vmem>>, vector<1x1x7x8xf32>,
    %cst_42 = arith.constant 1.000000e+00 : f32
    %87 = vector.broadcast %cst_42 : f32 to vector<8x16xf32>
    %88 = arith.cmpf oeq, %66, %87 : vector<8x16xf32>
    %cst_43 = arith.constant 1.000000e+00 : f32
    %cst_44 = arith.constant 0.000000e+00 : f32
    %89 = vector.broadcast %cst_43 : f32 to vector<8x16xf32>
    %90 = vector.broadcast %cst_44 : f32 to vector<8x16xf32>
    %91 = arith.select %88, %89, %90 : vector<8x16xi1>, vector<8x16xf32>
    %cst_45 = arith.constant dense<0.000000e+00> : vector<7x8xf32>
    %92 = tpu.matmul %8, %91, %cst_45 {dimension_numbers = #tpu.dot_dimension_numbers<[1], [1], [0], [0], [0, 0, 1, 0], [], []>} : vector<7x16xf32>, vector<8x16xf32>, vector<7x8xf32> -> vector<7x8xf32>
    %c0_46 = arith.constant 0 : index
    %c1 = arith.constant 1 : index
    %c0_47 = arith.constant 0 : index
    %c0_48 = arith.constant 0 : index
    %93 = vector.load %arg7[%c0_46, %c1, %c0_47, %c0_48] : memref<1x4x7x8xf32, #tpu.memory_space<vmem>>, vector<1x1x7x8xf32>
    %94 = vector.shape_cast %93 : vector<1x1x7x8xf32> to vector<7x8xf32>
    %95 = arith.addf %94, %92 : vector<7x8xf32>
    %c0_49 = arith.constant 0 : index
    %c1_50 = arith.constant 1 : index
    %c0_51 = arith.constant 0 : index
    %c0_52 = arith.constant 0 : index
    %96 = vector.load %arg7[%c0_49, %c1_50, %c0_51, %c0_52] : memref<1x4x7x8xf32, #tpu.memory_space<vmem>>, vector<1x1x7x8xf32>
    %97 = vector.shape_cast %96 : vector<1x1x7x8xf32> to vector<7x8xf32>
    %98 = vector.shape_cast %95 : vector<7x8xf32> to vector<1x1x7x8xf32>
    tpu.vector_store %arg7[%c0_49, %c1_50, %c0_51, %c0_52], %98 {strides = array<i32>} : memref<1x4x7x8xf32, #tpu.memory_space<vmem>>, vector<1x1x7x8xf32>,
    %cst_53 = arith.constant 2.000000e+00 : f32
    %99 = vector.broadcast %cst_53 : f32 to vector<8x16xf32>
    %100 = arith.cmpf oeq, %66, %99 : vector<8x16xf32>
    %cst_54 = arith.constant 1.000000e+00 : f32
    %cst_55 = arith.constant 0.000000e+00 : f32
    %101 = vector.broadcast %cst_54 : f32 to vector<8x16xf32>
    %102 = vector.broadcast %cst_55 : f32 to vector<8x16xf32>
    %103 = arith.select %100, %101, %102 : vector<8x16xi1>, vector<8x16xf32>
    %cst_56 = arith.constant dense<0.000000e+00> : vector<7x8xf32>
    %104 = tpu.matmul %8, %103, %cst_56 {dimension_numbers = #tpu.dot_dimension_numbers<[1], [1], [0], [0], [0, 0, 1, 0], [], []>} : vector<7x16xf32>, vector<8x16xf32>, vector<7x8xf32> -> vector<7x8xf32>
    %c0_57 = arith.constant 0 : index
    %c2 = arith.constant 2 : index
    %c0_58 = arith.constant 0 : index
    %c0_59 = arith.constant 0 : index
    %105 = vector.load %arg7[%c0_57, %c2, %c0_58, %c0_59] : memref<1x4x7x8xf32, #tpu.memory_space<vmem>>, vector<1x1x7x8xf32>
    %106 = vector.shape_cast %105 : vector<1x1x7x8xf32> to vector<7x8xf32>
    %107 = arith.addf %106, %104 : vector<7x8xf32>
    %c0_60 = arith.constant 0 : index
    %c2_61 = arith.constant 2 : index
    %c0_62 = arith.constant 0 : index
    %c0_63 = arith.constant 0 : index
    %108 = vector.load %arg7[%c0_60, %c2_61, %c0_62, %c0_63] : memref<1x4x7x8xf32, #tpu.memory_space<vmem>>, vector<1x1x7x8xf32>
    %109 = vector.shape_cast %108 : vector<1x1x7x8xf32> to vector<7x8xf32>
    %110 = vector.shape_cast %107 : vector<7x8xf32> to vector<1x1x7x8xf32>
    tpu.vector_store %arg7[%c0_60, %c2_61, %c0_62, %c0_63], %110 {strides = array<i32>} : memref<1x4x7x8xf32, #tpu.memory_space<vmem>>, vector<1x1x7x8xf32>,
    %cst_64 = arith.constant 3.000000e+00 : f32
    %111 = vector.broadcast %cst_64 : f32 to vector<8x16xf32>
    %112 = arith.cmpf oeq, %66, %111 : vector<8x16xf32>
    %cst_65 = arith.constant 1.000000e+00 : f32
    %cst_66 = arith.constant 0.000000e+00 : f32
    %113 = vector.broadcast %cst_65 : f32 to vector<8x16xf32>
    %114 = vector.broadcast %cst_66 : f32 to vector<8x16xf32>
    %115 = arith.select %112, %113, %114 : vector<8x16xi1>, vector<8x16xf32>
    %cst_67 = arith.constant dense<0.000000e+00> : vector<7x8xf32>
    %116 = tpu.matmul %8, %115, %cst_67 {dimension_numbers = #tpu.dot_dimension_numbers<[1], [1], [0], [0], [0, 0, 1, 0], [], []>} : vector<7x16xf32>, vector<8x16xf32>, vector<7x8xf32> -> vector<7x8xf32>
    %c0_68 = arith.constant 0 : index
    %c3 = arith.constant 3 : index
    %c0_69 = arith.constant 0 : index
    %c0_70 = arith.constant 0 : index
    %117 = vector.load %arg7[%c0_68, %c3, %c0_69, %c0_70] : memref<1x4x7x8xf32, #tpu.memory_space<vmem>>, vector<1x1x7x8xf32>
    %118 = vector.shape_cast %117 : vector<1x1x7x8xf32> to vector<7x8xf32>
    %119 = arith.addf %118, %116 : vector<7x8xf32>
    %c0_71 = arith.constant 0 : index
    %c3_72 = arith.constant 3 : index
    %c0_73 = arith.constant 0 : index
    %c0_74 = arith.constant 0 : index
    %120 = vector.load %arg7[%c0_71, %c3_72, %c0_73, %c0_74] : memref<1x4x7x8xf32, #tpu.memory_space<vmem>>, vector<1x1x7x8xf32>
    %121 = vector.shape_cast %120 : vector<1x1x7x8xf32> to vector<7x8xf32>
    %122 = vector.shape_cast %119 : vector<7x8xf32> to vector<1x1x7x8xf32>
    tpu.vector_store %arg7[%c0_71, %c3_72, %c0_73, %c0_74], %122 {strides = array<i32>} : memref<1x4x7x8xf32, #tpu.memory_space<vmem>>, vector<1x1x7x8xf32>,
    %c0_i32_75 = arith.constant 0 : i32
    %123 = arith.cmpi eq, %arg2, %c0_i32_75 : i32
    %124 = arith.extui %123 : i1 to i32
    %c0_i32_76 = arith.constant 0 : i32
    %125 = arith.cmpi ne, %124, %c0_i32_76 : i32
    scf.if %125 {
      %c0_77 = arith.constant 0 : index
      %c0_78 = arith.constant 0 : index
      %c0_79 = arith.constant 0 : index
      %126 = vector.load %arg4[%c0_77, %c0_78, %c0_79] : memref<1x3x8xf32, #tpu.memory_space<vmem>>, vector<1x3x8xf32>
      %127 = vector.shape_cast %126 : vector<1x3x8xf32> to vector<3x8xf32>
      %128 = tpu.iota {dimensions = array<i32: 0>} : vector<7x8xi32>
      %cst_80 = arith.constant 0.000000e+00 : f32
      %129 = vector.broadcast %cst_80 : f32 to vector<7x8xf32>
      %c0_i32_81 = arith.constant 0 : i32
      %130 = vector.broadcast %c0_i32_81 : i32 to vector<7x8xi32>
      %131 = arith.cmpi eq, %128, %130 : vector<7x8xi32>
      %132 = vector.extract_strided_slice %127 {offsets = [0, 0], sizes = [1, 8], strides = [1, 1]} : vector<3x8xf32> to vector<1x8xf32>
      %cst_82 = arith.constant 0.000000e+00 : f32
      %133 = vector.shape_cast %132 : vector<1x8xf32> to vector<1x8xf32>
      %134 = vector.broadcast %133 : vector<1x8xf32> to vector<7x8xf32>
      %135 = vector.broadcast %cst_82 : f32 to vector<7x8xf32>
      %136 = arith.select %131, %134, %135 : vector<7x8xi1>, vector<7x8xf32>
      %137 = arith.addf %129, %136 : vector<7x8xf32>
      %c1_i32_83 = arith.constant 1 : i32
      %138 = vector.broadcast %c1_i32_83 : i32 to vector<7x8xi32>
      %139 = arith.cmpi eq, %128, %138 : vector<7x8xi32>
      %140 = vector.extract_strided_slice %127 {offsets = [1, 0], sizes = [1, 8], strides = [1, 1]} : vector<3x8xf32> to vector<1x8xf32>
      %cst_84 = arith.constant 0.000000e+00 : f32
      %141 = vector.shape_cast %140 : vector<1x8xf32> to vector<1x8xf32>
      %142 = vector.broadcast %141 : vector<1x8xf32> to vector<7x8xf32>
      %143 = vector.broadcast %cst_84 : f32 to vector<7x8xf32>
      %144 = arith.select %139, %142, %143 : vector<7x8xi1>, vector<7x8xf32>
      %145 = arith.addf %137, %144 : vector<7x8xf32>
      %c2_i32_85 = arith.constant 2 : i32
      %146 = vector.broadcast %c2_i32_85 : i32 to vector<7x8xi32>
      %147 = arith.cmpi eq, %128, %146 : vector<7x8xi32>
      %148 = vector.extract_strided_slice %127 {offsets = [2, 0], sizes = [1, 8], strides = [1, 1]} : vector<3x8xf32> to vector<1x8xf32>
      %cst_86 = arith.constant 0.000000e+00 : f32
      %149 = vector.shape_cast %148 : vector<1x8xf32> to vector<1x8xf32>
      %150 = vector.broadcast %149 : vector<1x8xf32> to vector<7x8xf32>
      %151 = vector.broadcast %cst_86 : f32 to vector<7x8xf32>
      %152 = arith.select %147, %150, %151 : vector<7x8xi1>, vector<7x8xf32>
      %153 = arith.addf %145, %152 : vector<7x8xf32>
      %c0_87 = arith.constant 0 : index
      %c0_88 = arith.constant 0 : index
      %154 = vector.load %arg9[%c0_87, %c0_88] : memref<1x8xf32, #tpu.memory_space<vmem>>, vector<1x8xf32>
      %c0_89 = arith.constant 0 : index
      %c0_90 = arith.constant 0 : index
      %c0_91 = arith.constant 0 : index
      %c0_92 = arith.constant 0 : index
      %155 = vector.load %arg7[%c0_89, %c0_90, %c0_91, %c0_92] : memref<1x4x7x8xf32, #tpu.memory_space<vmem>>, vector<1x1x7x8xf32>
      %156 = vector.shape_cast %155 : vector<1x1x7x8xf32> to vector<7x8xf32>
      %c0_93 = arith.constant 0 : index
      %c0_94 = arith.constant 0 : index
      %157 = vector.load %arg10[%c0_93, %c0_94] : memref<7x1xf32, #tpu.memory_space<vmem>>, vector<7x1xf32>
      %158 = vector.shape_cast %157 : vector<7x1xf32> to vector<7x1xf32>
      %159 = vector.broadcast %158 : vector<7x1xf32> to vector<7x8xf32>
      %cst_95 = arith.constant 0.000000e+00 : f32
      %160 = vector.broadcast %cst_95 : f32 to vector<1x8xf32>
      %161 = arith.cmpf ogt, %154, %160 : vector<1x8xf32>
      %162 = vector.shape_cast %161 : vector<1x8xi1> to vector<1x8xi1>
      %163 = vector.broadcast %162 : vector<1x8xi1> to vector<7x8xi1>
      %164 = arith.select %163, %156, %159 : vector<7x8xi1>, vector<7x8xf32>
      %165 = arith.subf %164, %153 : vector<7x8xf32>
      %c0_96 = arith.constant 0 : index
      %c0_97 = arith.constant 0 : index
      %c0_98 = arith.constant 0 : index
      %c0_99 = arith.constant 0 : index
      %166 = vector.load %arg7[%c0_96, %c0_97, %c0_98, %c0_99] : memref<1x4x7x8xf32, #tpu.memory_space<vmem>>, vector<1x1x7x8xf32>
      %167 = vector.shape_cast %166 : vector<1x1x7x8xf32> to vector<7x8xf32>
      %168 = vector.shape_cast %165 : vector<7x8xf32> to vector<1x1x7x8xf32>
      tpu.vector_store %arg7[%c0_96, %c0_97, %c0_98, %c0_99], %168 {strides = array<i32>} : memref<1x4x7x8xf32, #tpu.memory_space<vmem>>, vector<1x1x7x8xf32>,
      %c0_100 = arith.constant 0 : index
      %c1_101 = arith.constant 1 : index
      %c0_102 = arith.constant 0 : index
      %c0_103 = arith.constant 0 : index
      %169 = vector.load %arg7[%c0_100, %c1_101, %c0_102, %c0_103] : memref<1x4x7x8xf32, #tpu.memory_space<vmem>>, vector<1x1x7x8xf32>
      %170 = vector.shape_cast %169 : vector<1x1x7x8xf32> to vector<7x8xf32>
      %171 = arith.subf %170, %153 : vector<7x8xf32>
      %cst_104 = arith.constant 1.000000e+00 : f32
      %172 = vector.broadcast %cst_104 : f32 to vector<1x8xf32>
      %173 = arith.cmpf ogt, %154, %172 : vector<1x8xf32>
      %174 = vector.shape_cast %173 : vector<1x8xi1> to vector<1x8xi1>
      %175 = vector.broadcast %174 : vector<1x8xi1> to vector<7x8xi1>
      %176 = arith.select %175, %171, %165 : vector<7x8xi1>, vector<7x8xf32>
      %c0_105 = arith.constant 0 : index
      %c1_106 = arith.constant 1 : index
      %c0_107 = arith.constant 0 : index
      %c0_108 = arith.constant 0 : index
      %177 = vector.load %arg7[%c0_105, %c1_106, %c0_107, %c0_108] : memref<1x4x7x8xf32, #tpu.memory_space<vmem>>, vector<1x1x7x8xf32>
      %178 = vector.shape_cast %177 : vector<1x1x7x8xf32> to vector<7x8xf32>
      %179 = vector.shape_cast %176 : vector<7x8xf32> to vector<1x1x7x8xf32>
      tpu.vector_store %arg7[%c0_105, %c1_106, %c0_107, %c0_108], %179 {strides = array<i32>} : memref<1x4x7x8xf32, #tpu.memory_space<vmem>>, vector<1x1x7x8xf32>,
      %c0_109 = arith.constant 0 : index
      %c2_110 = arith.constant 2 : index
      %c0_111 = arith.constant 0 : index
      %c0_112 = arith.constant 0 : index
      %180 = vector.load %arg7[%c0_109, %c2_110, %c0_111, %c0_112] : memref<1x4x7x8xf32, #tpu.memory_space<vmem>>, vector<1x1x7x8xf32>
      %181 = vector.shape_cast %180 : vector<1x1x7x8xf32> to vector<7x8xf32>
      %182 = arith.subf %181, %153 : vector<7x8xf32>
      %cst_113 = arith.constant 2.000000e+00 : f32
      %183 = vector.broadcast %cst_113 : f32 to vector<1x8xf32>
      %184 = arith.cmpf ogt, %154, %183 : vector<1x8xf32>
      %185 = vector.shape_cast %184 : vector<1x8xi1> to vector<1x8xi1>
      %186 = vector.broadcast %185 : vector<1x8xi1> to vector<7x8xi1>
      %187 = arith.select %186, %182, %165 : vector<7x8xi1>, vector<7x8xf32>
      %c0_114 = arith.constant 0 : index
      %c2_115 = arith.constant 2 : index
      %c0_116 = arith.constant 0 : index
      %c0_117 = arith.constant 0 : index
      %188 = vector.load %arg7[%c0_114, %c2_115, %c0_116, %c0_117] : memref<1x4x7x8xf32, #tpu.memory_space<vmem>>, vector<1x1x7x8xf32>
      %189 = vector.shape_cast %188 : vector<1x1x7x8xf32> to vector<7x8xf32>
      %190 = vector.shape_cast %187 : vector<7x8xf32> to vector<1x1x7x8xf32>
      tpu.vector_store %arg7[%c0_114, %c2_115, %c0_116, %c0_117], %190 {strides = array<i32>} : memref<1x4x7x8xf32, #tpu.memory_space<vmem>>, vector<1x1x7x8xf32>,
      %c0_118 = arith.constant 0 : index
      %c3_119 = arith.constant 3 : index
      %c0_120 = arith.constant 0 : index
      %c0_121 = arith.constant 0 : index
      %191 = vector.load %arg7[%c0_118, %c3_119, %c0_120, %c0_121] : memref<1x4x7x8xf32, #tpu.memory_space<vmem>>, vector<1x1x7x8xf32>
      %192 = vector.shape_cast %191 : vector<1x1x7x8xf32> to vector<7x8xf32>
      %193 = arith.subf %192, %153 : vector<7x8xf32>
      %cst_122 = arith.constant 3.000000e+00 : f32
      %194 = vector.broadcast %cst_122 : f32 to vector<1x8xf32>
      %195 = arith.cmpf ogt, %154, %194 : vector<1x8xf32>
      %196 = vector.shape_cast %195 : vector<1x8xi1> to vector<1x8xi1>
      %197 = vector.broadcast %196 : vector<1x8xi1> to vector<7x8xi1>
      %198 = arith.select %197, %193, %165 : vector<7x8xi1>, vector<7x8xf32>
      %c0_123 = arith.constant 0 : index
      %c3_124 = arith.constant 3 : index
      %c0_125 = arith.constant 0 : index
      %c0_126 = arith.constant 0 : index
      %199 = vector.load %arg7[%c0_123, %c3_124, %c0_125, %c0_126] : memref<1x4x7x8xf32, #tpu.memory_space<vmem>>, vector<1x1x7x8xf32>
      %200 = vector.shape_cast %199 : vector<1x1x7x8xf32> to vector<7x8xf32>
      %201 = vector.shape_cast %198 : vector<7x8xf32> to vector<1x1x7x8xf32>
      tpu.vector_store %arg7[%c0_123, %c3_124, %c0_125, %c0_126], %201 {strides = array<i32>} : memref<1x4x7x8xf32, #tpu.memory_space<vmem>>, vector<1x1x7x8xf32>,
    } else {
    }
    return
  }
  func.func @transform_0(%arg0: i32, %arg1: i32, %arg2: i32) -> (i32, i32, i32) {
    %c0_i32 = arith.constant 0 : i32
    %c0_i32_0 = arith.constant 0 : i32
    return %arg0, %arg1, %c0_i32 : i32, i32, i32
  }
  func.func @transform_1(%arg0: i32, %arg1: i32, %arg2: i32) -> (i32, i32, i32) {
    %c0_i32 = arith.constant 0 : i32
    %c0_i32_0 = arith.constant 0 : i32
    return %arg0, %c0_i32, %arg1 : i32, i32, i32
  }
  func.func @transform_2(%arg0: i32, %arg1: i32, %arg2: i32) -> (i32, i32, i32) {
    %c0_i32 = arith.constant 0 : i32
    %c0_i32_0 = arith.constant 0 : i32
    return %arg0, %c0_i32, %arg2 : i32, i32, i32
  }
  func.func @transform_3(%arg0: i32, %arg1: i32, %arg2: i32) -> (i32, i32, i32) {
    %c0_i32 = arith.constant 0 : i32
    %c0_i32_0 = arith.constant 0 : i32
    return %arg0, %c0_i32, %arg2 : i32, i32, i32
  }
  func.func @transform_4(%arg0: i32, %arg1: i32, %arg2: i32) -> (i32, i32, i32, i32) {
    %c0_i32 = arith.constant 0 : i32
    %c0_i32_0 = arith.constant 0 : i32
    %c0_i32_1 = arith.constant 0 : i32
    return %arg0, %c0_i32, %c0_i32_0, %arg1 : i32, i32, i32, i32
  }
}

</mosaic_0001>

<llo_original>
// kernel: tpu_custom_call.1
$region0: #{tpu_custom_call.1}
  #allocation0 [shape = 'u32[]', space=smem, size = 0x4, offset = 0x4, fixed_abs, tag = 'smem constant byte address 0x4 - core index']
  #allocation1 [shape = 'u32[144,128]{1,0:T(1,128)}', space=vmem, size = 0x12000, scoped, tag = 'internal scratch']
  #allocation2 [shape = 'f32[8,1]{1,0:T(8,128)}', space=vmem, size = 0x1000, scoped, tag = 'scratch operand']
  #allocation3 [shape = 'f32[1,8]{1,0:T(1,128)}', space=vmem, size = 0x200, scoped, tag = 'scratch operand']
  #allocation4 [shape = 'f32[7,1]{1,0:T(8,128)}', space=vmem, size = 0x1000, scoped, tag = 'scratch operand']
  %s0 = inlined_call_operand.vmem [shape: f32[2,8,3], index: 0, kind: input, shape index: {}]
  %s1 = inlined_call_operand.vmem [shape: f32[2,3,8], index: 1, kind: input, shape index: {}]
  %s2 = inlined_call_operand.vmem [shape: f32[2,3,16], index: 2, kind: input, shape index: {}]
  %s3 = inlined_call_operand.vmem [shape: f32[2,7,16], index: 3, kind: input, shape index: {}]
  %s4 = inlined_call_operand.vmem [shape: f32[2,4,7,8], index: 4, kind: output, shape index: {}]
  %s5 = sld [smem:[#allocation0]]
  $region57: #{tpu_custom_call.1} parent=0
    _
  %s7 = ssub.s32 1, %s5
  %s8 = scalar_select 0, %s7, %s5
  loop: start=0, step=1, limit=4
  $region2: #{tpu_custom_call.1} parent=0 // loop_pre_header
    _
  $region3: #{tpu_custom_call.1} parent=0 // loop_header
    %s10 = sphi 0, %s14
    %p11 = scmp.ge.s32.totalorder %s10, 4
    %s17 = sphi 0, %s36
    %s18 = sphi 0, %s32
    %s19 = sphi 0, %s28
    %s20 = sphi 0, %s17
    %s21 = sphi 0, %s18
    %s22 = sphi 0, %s19
    %s23 = sphi 0, %s20
    %s24 = sphi 0, %s21
    %s25 = sphi 0, %s22
    %s41 = sphi 0, %s43
    %s44 = sphi 0, %s41
    %s45 = sphi 0, %s44
    %s61 = sphi 0, %s45
    %s69 = sphi 0, %s71
    %s72 = sphi 0, %s69
    %s73 = sphi 0, %s72
    %s89 = sphi 0, %s73
    %s97 = sphi 0, %s99
    %s100 = sphi 0, %s97
    %s101 = sphi 0, %s100
    %s117 = sphi 0, %s101
    %s125 = sphi 0, %s127
    %s128 = sphi 0, %s125
    %s129 = sphi 0, %s128
    %s145 = sphi 0, %s129
    %s153 = sphi 0, %s155
    %s156 = sphi 0, %s153
    %s157 = sphi 0, %s156
    %s173 = sphi 0, %s157
  $region4: #{tpu_custom_call.1} parent=0 // loop_header_branch
    %13 = sbr.rel (%p11) target = $region8
  $region5: #{tpu_custom_call.1} parent=0 // loop_body
    %s15 = ssub.s32 %s10, 1
    %s16 = ssub.s32 %s10, 2
    %s26 = sadd.s32 1, %s19
    %p27 = scmp.ge.s32.totalorder %s26, 1
    %s28 = scalar_select %p27, 0, %s26
    %s29 = sadd.s32 1, %s18
    %s30 = scalar_select %p27, %s29, %s18
    %p31 = scmp.ge.s32.totalorder %s30, 1
    %s32 = scalar_select %p31, 0, %s30
    %s33 = sadd.s32 1, %s17
    %s34 = scalar_select %p31, %s33, %s17
    %p35 = scmp.ge.s32.totalorder %s34, 2
    %s36 = scalar_select %p35, 0, %s34
    %s37 = ssub.s32 %s17, %s36
    %s38 = ssub.s32 %s18, %s32
    %s39 = sor.u32 %s37, %s38
    %p40 = scmp.eq.s32.totalorder %s39, 0
    %s42 = sadd.s32 %s41, 1
    %s43 = scalar_select %p40, %s41, %s42
    %p46 = pneg %p40
    %p47 = scmp.eq.s32.totalorder %s10, 1
    %p48 = por %p46, %p47
    %p49 = scmp.ne.s32.totalorder %s41, %s44
    %p50 = scmp.eq.s32.totalorder %s10, 0
    %p51 = por %p49, %p50
    %p52 = scmp.ne.s32.totalorder %s41, %s44
    %p53 = scmp.eq.s32.totalorder %s15, 1
    %p54 = por %p52, %p53
    %p55 = scmp.ne.s32.totalorder %s44, %s45
    %p56 = scmp.eq.s32.totalorder %s15, 0
    %p57 = por %p55, %p56
    %p58 = scmp.ne.s32.totalorder %s44, %s45
    %p59 = scmp.eq.s32.totalorder %s16, 1
    %p60 = por %p58, %p59
    %p62 = scmp.ne.s32.totalorder %s45, %s61
    %p63 = scmp.eq.s32.totalorder %s16, 0
    %p64 = por %p62, %p63
    %s65 = ssub.s32 %s17, %s36
    %s66 = ssub.s32 %s18, %s32
    %s67 = sor.u32 %s65, %s66
    %p68 = scmp.eq.s32.totalorder %s67, 0
    %s70 = sadd.s32 %s69, 1
    %s71 = scalar_select %p68, %s69, %s70
    %p74 = pneg %p68
    %p75 = scmp.eq.s32.totalorder %s10, 1
    %p76 = por %p74, %p75
    %p77 = scmp.ne.s32.totalorder %s69, %s72
    %p78 = scmp.eq.s32.totalorder %s10, 0
    %p79 = por %p77, %p78
    %p80 = scmp.ne.s32.totalorder %s69, %s72
    %p81 = scmp.eq.s32.totalorder %s15, 1
    %p82 = por %p80, %p81
    %p83 = scmp.ne.s32.totalorder %s72, %s73
    %p84 = scmp.eq.s32.totalorder %s15, 0
    %p85 = por %p83, %p84
    %p86 = scmp.ne.s32.totalorder %s72, %s73
    %p87 = scmp.eq.s32.totalorder %s16, 1
    %p88 = por %p86, %p87
    %p90 = scmp.ne.s32.totalorder %s73, %s89
    %p91 = scmp.eq.s32.totalorder %s16, 0
    %p92 = por %p90, %p91
    %s93 = ssub.s32 %s17, %s36
    %s94 = ssub.s32 %s19, %s28
    %s95 = sor.u32 %s93, %s94
    %p96 = scmp.eq.s32.totalorder %s95, 0
    %s98 = sadd.s32 %s97, 1
    %s99 = scalar_select %p96, %s97, %s98
    %p102 = pneg %p96
    %p103 = scmp.eq.s32.totalorder %s10, 1
    %p104 = por %p102, %p103
    %p105 = scmp.ne.s32.totalorder %s97, %s100
    %p106 = scmp.eq.s32.totalorder %s10, 0
    %p107 = por %p105, %p106
    %p108 = scmp.ne.s32.totalorder %s97, %s100
    %p109 = scmp.eq.s32.totalorder %s15, 1
    %p110 = por %p108, %p109
    %p111 = scmp.ne.s32.totalorder %s100, %s101
    %p112 = scmp.eq.s32.totalorder %s15, 0
    %p113 = por %p111, %p112
    %p114 = scmp.ne.s32.totalorder %s100, %s101
    %p115 = scmp.eq.s32.totalorder %s16, 1
    %p116 = por %p114, %p115
    %p118 = scmp.ne.s32.totalorder %s101, %s117
    %p119 = scmp.eq.s32.totalorder %s16, 0
    %p120 = por %p118, %p119
    %s121 = ssub.s32 %s17, %s36
    %s122 = ssub.s32 %s19, %s28
    %s123 = sor.u32 %s121, %s122
    %p124 = scmp.eq.s32.totalorder %s123, 0
    %s126 = sadd.s32 %s125, 1
    %s127 = scalar_select %p124, %s125, %s126
    %p130 = pneg %p124
    %p131 = scmp.eq.s32.totalorder %s10, 1
    %p132 = por %p130, %p131
    %p133 = scmp.ne.s32.totalorder %s125, %s128
    %p134 = scmp.eq.s32.totalorder %s10, 0
    %p135 = por %p133, %p134
    %p136 = scmp.ne.s32.totalorder %s125, %s128
    %p137 = scmp.eq.s32.totalorder %s15, 1
    %p138 = por %p136, %p137
    %p139 = scmp.ne.s32.totalorder %s128, %s129
    %p140 = scmp.eq.s32.totalorder %s15, 0
    %p141 = por %p139, %p140
    %p142 = scmp.ne.s32.totalorder %s128, %s129
    %p143 = scmp.eq.s32.totalorder %s16, 1
    %p144 = por %p142, %p143
    %p146 = scmp.ne.s32.totalorder %s129, %s145
    %p147 = scmp.eq.s32.totalorder %s16, 0
    %p148 = por %p146, %p147
    %s149 = ssub.s32 %s17, %s36
    %s150 = ssub.s32 %s18, %s32
    %s151 = sor.u32 %s149, %s150
    %p152 = scmp.eq.s32.totalorder %s151, 0
    %s154 = sadd.s32 %s153, 1
    %s155 = scalar_select %p152, %s153, %s154
    %p158 = pneg %p152
    %p159 = scmp.eq.s32.totalorder %s10, 1
    %p160 = por %p158, %p159
    %p161 = scmp.ne.s32.totalorder %s153, %s156
    %p162 = scmp.eq.s32.totalorder %s10, 0
    %p163 = por %p161, %p162
    %p164 = scmp.ne.s32.totalorder %s153, %s156
    %p165 = scmp.eq.s32.totalorder %s15, 1
    %p166 = por %p164, %p165
    %p167 = scmp.ne.s32.totalorder %s156, %s157
    %p168 = scmp.eq.s32.totalorder %s15, 0
    %p169 = por %p167, %p168
    %p170 = scmp.ne.s32.totalorder %s156, %s157
    %p171 = scmp.eq.s32.totalorder %s16, 1
    %p172 = por %p170, %p171
    %p174 = scmp.ne.s32.totalorder %s157, %s173
    %p175 = scmp.eq.s32.totalorder %s16, 0
    %p176 = por %p174, %p175
    %p177 = scmp.le.s32.totalorder 1, %s10
    %p178 = scmp.lt.s32.totalorder %s10, 3
    %p179 = pnand %p177, %p178
    %p180 = pneg %p179
    // Predicated region
    $region9: #{tpu_custom_call.1} parent=5 // pred_check
      _
    $region10: #{tpu_custom_call.1} parent=5 // pred_check_branch
      %182 = sbr.rel (%p179) target = $region12
    $region11: #{tpu_custom_call.1} parent=5 // pred_region
      %s183 = ssub.s32 %s10, 1
    $region12: #{tpu_custom_call.1} parent=5 // pred_fallthru
      _
    %p184 = scmp.lt.s32.totalorder %s10, 2
    // Predicated region
    $region13: #{tpu_custom_call.1} parent=5 // pred_check
      %p185 = pneg %p184
    $region14: #{tpu_custom_call.1} parent=5 // pred_check_branch
      %187 = sbr.rel (%p185) target = $region16
    $region15: #{tpu_custom_call.1} parent=5 // pred_region
      // Predicated region
      $region17: #{tpu_custom_call.1} parent=15 // pred_check
        %p188 = pneg %p51
      $region18: #{tpu_custom_call.1} parent=15 // pred_check_branch
        %190 = sbr.rel (%p188) target = $region20
      $region19: #{tpu_custom_call.1} parent=15 // pred_region
        %p191 = scmp.lt.s32.totalorder %s17, 1
        %s192 = scalar_select %p191, %s17, 1
        %p193 = scmp.lt.s32.totalorder %s18, 0
        %s194 = scalar_select %p193, %s18, 0
        %s195 = sadd.s32 %s194, %s192
        %s196 = smul.addr %s195, 8
        %s197 = scalar_lea.vmem %s0, %s196
      $region20: #{tpu_custom_call.1} parent=15 // pred_fallthru
        _
      // Predicated region
      $region21: #{tpu_custom_call.1} parent=15 // pred_check
        %p198 = pneg %p79
      $region22: #{tpu_custom_call.1} parent=15 // pred_check_branch
        %200 = sbr.rel (%p198) target = $region24
      $region23: #{tpu_custom_call.1} parent=15 // pred_region
        %p201 = scmp.lt.s32.totalorder %s17, 1
        %s202 = scalar_select %p201, %s17, 1
        %p203 = scmp.lt.s32.totalorder %s18, 0
        %s204 = scalar_select %p203, %s18, 0
        %s205 = sadd.s32 %s204, %s202
        %s206 = smul.addr %s205, 4
        %s207 = scalar_lea.vmem %s1, %s206
      $region24: #{tpu_custom_call.1} parent=15 // pred_fallthru
        _
      // Predicated region
      $region25: #{tpu_custom_call.1} parent=15 // pred_check
        %p208 = pneg %p107
      $region26: #{tpu_custom_call.1} parent=15 // pred_check_branch
        %210 = sbr.rel (%p208) target = $region28
      $region27: #{tpu_custom_call.1} parent=15 // pred_region
        %p211 = scmp.lt.s32.totalorder %s17, 1
        %s212 = scalar_select %p211, %s17, 1
        %p213 = scmp.lt.s32.totalorder %s19, 0
        %s214 = scalar_select %p213, %s19, 0
        %s215 = sadd.s32 %s214, %s212
        %s216 = smul.addr %s215, 4
        %s217 = scalar_lea.vmem %s2, %s216
      $region28: #{tpu_custom_call.1} parent=15 // pred_fallthru
        _
      // Predicated region
      $region29: #{tpu_custom_call.1} parent=15 // pred_check
        %p218 = pneg %p135
      $region30: #{tpu_custom_call.1} parent=15 // pred_check_branch
        %220 = sbr.rel (%p218) target = $region32
      $region31: #{tpu_custom_call.1} parent=15 // pred_region
        %p221 = scmp.lt.s32.totalorder %s17, 1
        %s222 = scalar_select %p221, %s17, 1
        %p223 = scmp.lt.s32.totalorder %s19, 0
        %s224 = scalar_select %p223, %s19, 0
        %s225 = sadd.s32 %s224, %s222
        %s226 = smul.addr %s225, 8
        %s227 = scalar_lea.vmem %s3, %s226
      $region32: #{tpu_custom_call.1} parent=15 // pred_fallthru
        _
    $region16: #{tpu_custom_call.1} parent=5 // pred_fallthru
      _
    %p228 = scmp.le.s32.totalorder 1, %s10
    %p229 = scmp.lt.s32.totalorder %s10, 3
    %p230 = pnand %p228, %p229
    %p231 = pneg %p230
    // Predicated region
    $region33: #{tpu_custom_call.1} parent=5 // pred_check
      _
    $region34: #{tpu_custom_call.1} parent=5 // pred_check_branch
      %233 = sbr.rel (%p230) target = $region36
    $region35: #{tpu_custom_call.1} parent=5 // pred_region
      %s234 = ssub.s32 %s10, 1
      %p235 = scmp.lt.s32.totalorder %s20, 1
      %s236 = scalar_select %p235, %s20, 1
      %p237 = scmp.lt.s32.totalorder %s21, 0
      %s238 = scalar_select %p237, %s21, 0
      %s239 = sadd.s32 %s238, %s236
      %s240 = smul.addr %s239, 8
      %s241 = scalar_lea.vmem %s0, %s240
      %p242 = pneg %p57
      %p243 = pneg %p54
      %p244 = scmp.lt.s32.totalorder %s20, 1
      %s245 = scalar_select %p244, %s20, 1
      %p246 = scmp.lt.s32.totalorder %s21, 0
      %s247 = scalar_select %p246, %s21, 0
      %s248 = sadd.s32 %s247, %s245
      %s249 = smul.addr %s248, 4
      %s250 = scalar_lea.vmem %s1, %s249
      %p251 = pneg %p85
      %p252 = pneg %p82
      %p253 = scmp.lt.s32.totalorder %s20, 1
      %s254 = scalar_select %p253, %s20, 1
      %p255 = scmp.lt.s32.totalorder %s22, 0
      %s256 = scalar_select %p255, %s22, 0
      %s257 = sadd.s32 %s256, %s254
      %s258 = smul.addr %s257, 4
      %s259 = scalar_lea.vmem %s2, %s258
      %p260 = pneg %p113
      %p261 = pneg %p110
      %p262 = scmp.lt.s32.totalorder %s20, 1
      %s263 = scalar_select %p262, %s20, 1
      %p264 = scmp.lt.s32.totalorder %s22, 0
      %s265 = scalar_select %p264, %s22, 0
      %s266 = sadd.s32 %s265, %s263
      %s267 = smul.addr %s266, 8
      %s268 = scalar_lea.vmem %s3, %s267
      %p269 = pneg %p141
      %p270 = pneg %p138
      %p271 = pneg %p169
      %p272 = pneg %p166
      %p273 = scmp.lt.s32.totalorder %s20, 1
      %s274 = scalar_select %p273, %s20, 1
      %p275 = scmp.lt.s32.totalorder %s21, 0
      %s276 = scalar_select %p275, %s21, 0
      %s277 = smul.addr %s274, 4
      %s278 = sadd.s32 %s276, %s277
      %s279 = smul.addr %s278, 8
      %s280 = scalar_lea.vmem %s4, %s279
      %p281 = scmp.lt.s32.totalorder %s20, 1
      %s282 = scalar_select %p281, %s20, 1
      %p283 = scmp.lt.s32.totalorder %s21, 0
      %s284 = scalar_select %p283, %s21, 0
      %s285 = sadd.s32 %s284, %s282
      %s286 = smul.addr %s285, 8
      %s287 = scalar_lea.vmem %s0, %s286
      %p288 = scmp.lt.s32.totalorder %s20, 1
      %s289 = scalar_select %p288, %s20, 1
      %p290 = scmp.lt.s32.totalorder %s21, 0
      %s291 = scalar_select %p290, %s21, 0
      %s292 = sadd.s32 %s291, %s289
      %s293 = smul.addr %s292, 4
      %s294 = scalar_lea.vmem %s1, %s293
      %p295 = scmp.lt.s32.totalorder %s20, 1
      %s296 = scalar_select %p295, %s20, 1
      %p297 = scmp.lt.s32.totalorder %s22, 0
      %s298 = scalar_select %p297, %s22, 0
      %s299 = sadd.s32 %s298, %s296
      %s300 = smul.addr %s299, 4
      %s301 = scalar_lea.vmem %s2, %s300
      %p302 = scmp.lt.s32.totalorder %s20, 1
      %s303 = scalar_select %p302, %s20, 1
      %p304 = scmp.lt.s32.totalorder %s22, 0
      %s305 = scalar_select %p304, %s22, 0
      %s306 = sadd.s32 %s305, %s303
      %s307 = smul.addr %s306, 8
      %s308 = scalar_lea.vmem %s3, %s307
      %p309 = scmp.lt.s32.totalorder %s20, 1
      %s310 = scalar_select %p309, %s20, 1
      %p311 = scmp.lt.s32.totalorder %s21, 0
      %s312 = scalar_select %p311, %s21, 0
      %s313 = smul.addr %s310, 4
      %s314 = sadd.s32 %s312, %s313
      %s315 = smul.addr %s314, 8
      %s316 = scalar_lea.vmem %s4, %s315
      %p317 = scmp.eq.s32.totalorder %s22, 0
      // Predicated region
      $region37: #{tpu_custom_call.1} parent=35 // pred_check
        %p318 = pneg %p317
      $region38: #{tpu_custom_call.1} parent=35 // pred_check_branch
        %320 = sbr.rel (%p318) target = $region40
      $region39: #{tpu_custom_call.1} parent=35 // pred_region
        %vm321 = vcmask 63488
        %322 = vst.msk [vmem:[%s316] sm:$0x7f] %vm321, 0.0
        %323 = vst.msk [vmem:[%s316 + $0x8] sm:$0x7f] %vm321, 0.0
        %324 = vst.msk [vmem:[%s316 + $0x10] sm:$0x7f] %vm321, 0.0
        %325 = vst.msk [vmem:[%s316 + $0x18] sm:$0x7f] %vm321, 0.0
        %vm326 = vcmask 7168
        %327 = vst.msk [vmem:[#allocation2] sm:$0xff] %vm326, 0.0
        %vm328 = vcmask 57344
        %329 = vst.msk [vmem:[#allocation3] sm:$0x1] %vm328, 0.0
        %v330 = vld [vmem:[%s308] sm:$0x7f]
        %vm331 = vcmask 6144
        %332 = vst.msk [vmem:[#allocation4] sm:$0x7f] %vm331, %v330
      $region40: #{tpu_custom_call.1} parent=35 // pred_fallthru
        _
      %v333 = vld [vmem:[%s287] sm:$0xff]
      %v334 = vld [vmem:[%s301] sm:$0x7]
      %v335 = vld [vmem:[%s308] sm:$0x7f]
      %337 = vset.pattern.permute.xlu0 0
      %338 = vperm.xlu0 %337, %v333
      %v339 = vpop.permute.xlu0 %338
      %v341 = vlaneseq
      %v342 = vshrl.u32 %v341, 7
      %v343 = vsub.s32 0, %v342
      %v344 = vrot.slane %v334, %v343
      %v345 = vsub.f32 %v339, %v344
      %v346 = vmul.f32 %v345, %v345
      %v347 = vadd.f32 %v346, 0.0
      %348 = vset.pattern.permute.xlu0 1
      %349 = vperm.xlu0 %348, %v333
      %v350 = vpop.permute.xlu0 %349
      %v352 = vlaneseq
      %v353 = vshrl.u32 %v352, 7
      %v354 = vsub.s32 1, %v353
      %v355 = vrot.slane %v334, %v354
      %v356 = vsub.f32 %v350, %v355
      %v357 = vmul.f32 %v356, %v356
      %v358 = vadd.f32 %v347, %v357
      %359 = vset.pattern.permute.xlu0 2
      %360 = vperm.xlu0 %359, %v333
      %v361 = vpop.permute.xlu0 %360
      %v363 = vlaneseq
      %v364 = vshrl.u32 %v363, 7
      %v365 = vsub.s32 2, %v364
      %v366 = vrot.slane %v334, %v365
      %v367 = vsub.f32 %v361, %v366
      %v368 = vmul.f32 %v367, %v367
      %v369 = vadd.f32 %v358, %v368
      %vm370 = vcmp.lt.f32.partialorder %v369, 0.0625
      %v371 = vsel %vm370, 1, 0
      %v372 = vcvt.s32.f32 %v371
      %v373 = vlaneseq
      %v374 = vand.u32 %v373, 127
      %vm375 = vcmp.ge.s32.totalorder %v374, 1
      %vm376 = vcmask 1047680
      %377 = vrot.lane.b32.xlu0 %v372, 16
      %v378 = vpop.permute.xlu0 %377
      %v379 = vsel %vm376, %v378, %v372
      %380 = vrot.lane.b32.xlu0 %v379, 16
      %v381 = vpop.permute.xlu0 %380
      %v382 = vsel %vm376, %v381, %v372
      %384 = vrot.lane.b32.xlu0 %v382, 113
      %v385 = vpop.permute.xlu0 %384
      %v387 = vsel %vm375, %v385, 0.0
      %v388 = vadd.f32 %v372, %v387
      %vm389 = vcmp.ge.s32.totalorder %v374, 2
      %390 = vrot.lane.b32.xlu0 %v388, 16
      %v391 = vpop.permute.xlu0 %390
      %v392 = vsel %vm376, %v391, %v388
      %393 = vrot.lane.b32.xlu0 %v392, 16
      %v394 = vpop.permute.xlu0 %393
      %v395 = vsel %vm376, %v394, %v388
      %397 = vrot.lane.b32.xlu0 %v395, 114
      %v398 = vpop.permute.xlu0 %397
      %v400 = vsel %vm389, %v398, 0.0
      %v401 = vadd.f32 %v388, %v400
      %vm402 = vcmp.ge.s32.totalorder %v374, 4
      %403 = vrot.lane.b32.xlu0 %v401, 16
      %v404 = vpop.permute.xlu0 %403
      %v405 = vsel %vm376, %v404, %v401
      %406 = vrot.lane.b32.xlu0 %v405, 16
      %v407 = vpop.permute.xlu0 %406
      %v408 = vsel %vm376, %v407, %v401
      %410 = vrot.lane.b32.xlu0 %v408, 116
      %v411 = vpop.permute.xlu0 %410
      %v413 = vsel %vm402, %v411, 0.0
      %v414 = vadd.f32 %v401, %v413
      %vm415 = vcmp.ge.s32.totalorder %v374, 8
      %416 = vrot.lane.b32.xlu0 %v414, 16
      %v417 = vpop.permute.xlu0 %416
      %v418 = vsel %vm376, %v417, %v414
      %419 = vrot.lane.b32.xlu0 %v418, 16
      %v420 = vpop.permute.xlu0 %419
      %v421 = vsel %vm376, %v420, %v414
      %423 = vrot.lane.b32.xlu0 %v421, 120
      %v424 = vpop.permute.xlu0 %423
      %v426 = vsel %vm415, %v424, 0.0
      %v427 = vadd.f32 %v414, %v426
      %v428 = vld [vmem:[#allocation2] sm:$0xff]
      %430 = vset.pattern.permute.xlu0 0
      %431 = vperm.xlu0 %430, %v428
      %v432 = vpop.permute.xlu0 %431
      %v434 = vadd.f32 %v432, %v427
      %v435 = vsub.f32 %v434, 1.0
      %v436 = vsel %vm370, %v435, -1.0
      %438 = vrot.lane.b32.xlu0 %v427, 113
      %v439 = vpop.permute.xlu0 %438
      %v441 = vadd.f32 %v428, %v439
      %vm442 = vcmask 7168
      %443 = vst.msk [vmem:[#allocation2] sm:$0xff] %vm442, %v441
      %v444 = vld [vmem:[#allocation3] sm:$0x1]
      %vm445 = vcmask 130048
      %v447 = vsel %vm445, 1.0, 0
      %v450 = vsel %vm445, %v372, 0
      %452 = vmatprep.subr.mxu0 0.0
      %453 = vmatpush1.xpose.msra.mxu0 0.0
      %454 = vmatprep.subr.mxu0 0.0
      %455 = vmatpush1.xpose.msra.mxu0 0.0
      %456 = vmatprep.subr.mxu0 0.0
      %457 = vmatpush1.xpose.msra.mxu0 0.0
      %458 = vmatprep.subr.mxu0 0.0
      %459 = vmatpush1.xpose.msra.mxu0 0.0
      %460 = vmatprep.subr.mxu0 0.0
      %461 = vmatpush1.xpose.msra.mxu0 0.0
      %462 = vmatprep.subr.mxu0 0.0
      %463 = vmatpush1.xpose.msra.mxu0 0.0
      %464 = vmatprep.subr.mxu0 0.0
      %465 = vmatpush1.xpose.msra.mxu0 0.0
      %466 = vmatprep.subr.mxu0 0.0
      %467 = vmatpush1.xpose.msra.mxu0 0.0
      %468 = vmatprep.subr.mxu0 0.0
      %469 = vmatpush1.xpose.msra.mxu0 0.0
      %470 = vmatprep.subr.mxu0 0.0
      %471 = vmatpush1.xpose.msra.mxu0 0.0
      %472 = vmatprep.subr.mxu0 0.0
      %473 = vmatpush1.xpose.msra.mxu0 0.0
      %474 = vmatprep.subr.mxu0 0.0
      %475 = vmatpush1.xpose.msra.mxu0 0.0
      %476 = vmatprep.subr.mxu0 0.0
      %477 = vmatpush1.xpose.msra.mxu0 0.0
      %478 = vmatprep.subr.mxu0 0.0
      %479 = vmatpush1.xpose.msra.mxu0 0.0
      %480 = vmatprep.subr.mxu0 0.0
      %481 = vmatpush1.xpose.msra.mxu0 0.0
      %482 = vmatprep.subr.mxu0 0.0
      %483 = vmatpush1.xpose.msra.mxu0 %v450
      %484 = vmatprep.subr.mxu0 0.0
      %485 = vmatpush2.xpose.msra.mxu0 0.0
      %486 = vmatprep.subr.mxu0 0.0
      %487 = vmatpush2.xpose.msra.mxu0 0.0
      %488 = vmatprep.subr.mxu0 0.0
      %489 = vmatpush2.xpose.msra.mxu0 0.0
      %490 = vmatprep.subr.mxu0 0.0
      %491 = vmatpush2.xpose.msra.mxu0 0.0
      %492 = vmatprep.subr.mxu0 0.0
      %493 = vmatpush2.xpose.msra.mxu0 0.0
      %494 = vmatprep.subr.mxu0 0.0
      %495 = vmatpush2.xpose.msra.mxu0 0.0
      %496 = vmatprep.subr.mxu0 0.0
      %497 = vmatpush2.xpose.msra.mxu0 0.0
      %498 = vmatprep.subr.mxu0 0.0
      %499 = vmatpush2.xpose.msra.mxu0 0.0
      %500 = vmatprep.subr.mxu0 0.0
      %501 = vmatpush2.xpose.msra.mxu0 0.0
      %502 = vmatprep.subr.mxu0 0.0
      %503 = vmatpush2.xpose.msra.mxu0 0.0
      %504 = vmatprep.subr.mxu0 0.0
      %505 = vmatpush2.xpose.msra.mxu0 0.0
      %506 = vmatprep.subr.mxu0 0.0
      %507 = vmatpush2.xpose.msra.mxu0 0.0
      %508 = vmatprep.subr.mxu0 0.0
      %509 = vmatpush2.xpose.msra.mxu0 0.0
      %510 = vmatprep.subr.mxu0 0.0
      %511 = vmatpush2.xpose.msra.mxu0 0.0
      %512 = vmatprep.subr.mxu0 0.0
      %513 = vmatpush2.xpose.msra.mxu0 0.0
      %514 = vmatprep.subr.mxu0 0.0
      %515 = vmatpush2.xpose.msra.mxu0 0.0
      %516 = vmatprep.mubr.f32.mxu0 0.0
      %517 = vmatmul.mubr.f32.gmra.mxu0 %v447
      %v518 = vpop.f32.mrf.mxu0
      %v519 = vadd.f32 0.0, %v518
      %v520 = vpop.f32.mrf.mxu0
      %521 = vdwg.mxu0
      %v522 = vadd.f32 %v444, %v519
      %vm523 = vcmask 57344
      %524 = vst.msk [vmem:[#allocation3] sm:$0x1] %vm523, %v522
      %vm525 = vcmp.eq.f32.partialorder %v436, 0.0
      %v526 = vsel %vm525, 1.0, 0.0
      %v528 = vsel %vm445, %v335, 0
      %v531 = vsel %vm445, %v526, 0
      %533 = vmatprep.subr.mxu0 0.0
      %534 = vmatpush1.xpose.msra.mxu0 0.0
      %535 = vmatprep.subr.mxu0 0.0
      %536 = vmatpush1.xpose.msra.mxu0 0.0
      %537 = vmatprep.subr.mxu0 0.0
      %538 = vmatpush1.xpose.msra.mxu0 0.0
      %539 = vmatprep.subr.mxu0 0.0
      %540 = vmatpush1.xpose.msra.mxu0 0.0
      %541 = vmatprep.subr.mxu0 0.0
      %542 = vmatpush1.xpose.msra.mxu0 0.0
      %543 = vmatprep.subr.mxu0 0.0
      %544 = vmatpush1.xpose.msra.mxu0 0.0
      %545 = vmatprep.subr.mxu0 0.0
      %546 = vmatpush1.xpose.msra.mxu0 0.0
      %547 = vmatprep.subr.mxu0 0.0
      %548 = vmatpush1.xpose.msra.mxu0 0.0
      %549 = vmatprep.subr.mxu0 0.0
      %550 = vmatpush1.xpose.msra.mxu0 0.0
      %551 = vmatprep.subr.mxu0 0.0
      %552 = vmatpush1.xpose.msra.mxu0 0.0
      %553 = vmatprep.subr.mxu0 0.0
      %554 = vmatpush1.xpose.msra.mxu0 0.0
      %555 = vmatprep.subr.mxu0 0.0
      %556 = vmatpush1.xpose.msra.mxu0 0.0
      %557 = vmatprep.subr.mxu0 0.0
      %558 = vmatpush1.xpose.msra.mxu0 0.0
      %559 = vmatprep.subr.mxu0 0.0
      %560 = vmatpush1.xpose.msra.mxu0 0.0
      %561 = vmatprep.subr.mxu0 0.0
      %562 = vmatpush1.xpose.msra.mxu0 0.0
      %563 = vmatprep.subr.mxu0 0.0
      %564 = vmatpush1.xpose.msra.mxu0 %v531
      %565 = vmatprep.subr.mxu0 0.0
      %566 = vmatpush2.xpose.msra.mxu0 0.0
      %567 = vmatprep.subr.mxu0 0.0
      %568 = vmatpush2.xpose.msra.mxu0 0.0
      %569 = vmatprep.subr.mxu0 0.0
      %570 = vmatpush2.xpose.msra.mxu0 0.0
      %571 = vmatprep.subr.mxu0 0.0
      %572 = vmatpush2.xpose.msra.mxu0 0.0
      %573 = vmatprep.subr.mxu0 0.0
      %574 = vmatpush2.xpose.msra.mxu0 0.0
      %575 = vmatprep.subr.mxu0 0.0
      %576 = vmatpush2.xpose.msra.mxu0 0.0
      %577 = vmatprep.subr.mxu0 0.0
      %578 = vmatpush2.xpose.msra.mxu0 0.0
      %579 = vmatprep.subr.mxu0 0.0
      %580 = vmatpush2.xpose.msra.mxu0 0.0
      %581 = vmatprep.subr.mxu0 0.0
      %582 = vmatpush2.xpose.msra.mxu0 0.0
      %583 = vmatprep.subr.mxu0 0.0
      %584 = vmatpush2.xpose.msra.mxu0 0.0
      %585 = vmatprep.subr.mxu0 0.0
      %586 = vmatpush2.xpose.msra.mxu0 0.0
      %587 = vmatprep.subr.mxu0 0.0
      %588 = vmatpush2.xpose.msra.mxu0 0.0
      %589 = vmatprep.subr.mxu0 0.0
      %590 = vmatpush2.xpose.msra.mxu0 0.0
      %591 = vmatprep.subr.mxu0 0.0
      %592 = vmatpush2.xpose.msra.mxu0 0.0
      %593 = vmatprep.subr.mxu0 0.0
      %594 = vmatpush2.xpose.msra.mxu0 0.0
      %595 = vmatprep.subr.mxu0 0.0
      %596 = vmatpush2.xpose.msra.mxu0 0.0
      %597 = vmatprep.mubr.f32.mxu0 0.0
      %598 = vmatmul.mubr.f32.gmra.mxu0 %v528
      %v599 = vpop.f32.mrf.mxu0
      %v600 = vadd.f32 0.0, %v599
      %v601 = vpop.f32.mrf.mxu0
      %602 = vdwg.mxu0
      %v603 = vld [vmem:[%s316] sm:$0x7f]
      %v604 = vadd.f32 %v603, %v600
      %vm605 = vcmask 63488
      %606 = vst.msk [vmem:[%s316] sm:$0x7f] %vm605, %v604
      %vm607 = vcmp.eq.f32.partialorder %v436, 1.0
      %v608 = vsel %vm607, 1.0, 0.0
      %v610 = vsel %vm445, %v608, 0
      %612 = vmatprep.subr.mxu0 0.0
      %613 = vmatpush1.xpose.msra.mxu0 0.0
      %614 = vmatprep.subr.mxu0 0.0
      %615 = vmatpush1.xpose.msra.mxu0 0.0
      %616 = vmatprep.subr.mxu0 0.0
      %617 = vmatpush1.xpose.msra.mxu0 0.0
      %618 = vmatprep.subr.mxu0 0.0
      %619 = vmatpush1.xpose.msra.mxu0 0.0
      %620 = vmatprep.subr.mxu0 0.0
      %621 = vmatpush1.xpose.msra.mxu0 0.0
      %622 = vmatprep.subr.mxu0 0.0
      %623 = vmatpush1.xpose.msra.mxu0 0.0
      %624 = vmatprep.subr.mxu0 0.0
      %625 = vmatpush1.xpose.msra.mxu0 0.0
      %626 = vmatprep.subr.mxu0 0.0
      %627 = vmatpush1.xpose.msra.mxu0 0.0
      %628 = vmatprep.subr.mxu0 0.0
      %629 = vmatpush1.xpose.msra.mxu0 0.0
      %630 = vmatprep.subr.mxu0 0.0
      %631 = vmatpush1.xpose.msra.mxu0 0.0
      %632 = vmatprep.subr.mxu0 0.0
      %633 = vmatpush1.xpose.msra.mxu0 0.0
      %634 = vmatprep.subr.mxu0 0.0
      %635 = vmatpush1.xpose.msra.mxu0 0.0
      %636 = vmatprep.subr.mxu0 0.0
      %637 = vmatpush1.xpose.msra.mxu0 0.0
      %638 = vmatprep.subr.mxu0 0.0
      %639 = vmatpush1.xpose.msra.mxu0 0.0
      %640 = vmatprep.subr.mxu0 0.0
      %641 = vmatpush1.xpose.msra.mxu0 0.0
      %642 = vmatprep.subr.mxu0 0.0
      %643 = vmatpush1.xpose.msra.mxu0 %v610
      %644 = vmatprep.subr.mxu0 0.0
      %645 = vmatpush2.xpose.msra.mxu0 0.0
      %646 = vmatprep.subr.mxu0 0.0
      %647 = vmatpush2.xpose.msra.mxu0 0.0
      %648 = vmatprep.subr.mxu0 0.0
      %649 = vmatpush2.xpose.msra.mxu0 0.0
      %650 = vmatprep.subr.mxu0 0.0
      %651 = vmatpush2.xpose.msra.mxu0 0.0
      %652 = vmatprep.subr.mxu0 0.0
      %653 = vmatpush2.xpose.msra.mxu0 0.0
      %654 = vmatprep.subr.mxu0 0.0
      %655 = vmatpush2.xpose.msra.mxu0 0.0
      %656 = vmatprep.subr.mxu0 0.0
      %657 = vmatpush2.xpose.msra.mxu0 0.0
      %658 = vmatprep.subr.mxu0 0.0
      %659 = vmatpush2.xpose.msra.mxu0 0.0
      %660 = vmatprep.subr.mxu0 0.0
      %661 = vmatpush2.xpose.msra.mxu0 0.0
      %662 = vmatprep.subr.mxu0 0.0
      %663 = vmatpush2.xpose.msra.mxu0 0.0
      %664 = vmatprep.subr.mxu0 0.0
      %665 = vmatpush2.xpose.msra.mxu0 0.0
      %666 = vmatprep.subr.mxu0 0.0
      %667 = vmatpush2.xpose.msra.mxu0 0.0
      %668 = vmatprep.subr.mxu0 0.0
      %669 = vmatpush2.xpose.msra.mxu0 0.0
      %670 = vmatprep.subr.mxu0 0.0
      %671 = vmatpush2.xpose.msra.mxu0 0.0
      %672 = vmatprep.subr.mxu0 0.0
      %673 = vmatpush2.xpose.msra.mxu0 0.0
      %674 = vmatprep.subr.mxu0 0.0
      %675 = vmatpush2.xpose.msra.mxu0 0.0
      %676 = vmatprep.mubr.f32.mxu0 0.0
      %677 = vmatmul.mubr.f32.gmra.mxu0 %v528
      %v678 = vpop.f32.mrf.mxu0
      %v679 = vadd.f32 0.0, %v678
      %v680 = vpop.f32.mrf.mxu0
      %681 = vdwg.mxu0
      %s682 = scalar_lea.vmem %s316, 8
      %v683 = vld [vmem:[%s682] sm:$0x7f]
      %v684 = vadd.f32 %v683, %v679
      %685 = vst.msk [vmem:[%s682] sm:$0x7f] %vm605, %v684
      %vm686 = vcmp.eq.f32.partialorder %v436, 2.0
      %v687 = vsel %vm686, 1.0, 0.0
      %v689 = vsel %vm445, %v687, 0
      %691 = vmatprep.subr.mxu0 0.0
      %692 = vmatpush1.xpose.msra.mxu0 0.0
      %693 = vmatprep.subr.mxu0 0.0
      %694 = vmatpush1.xpose.msra.mxu0 0.0
      %695 = vmatprep.subr.mxu0 0.0
      %696 = vmatpush1.xpose.msra.mxu0 0.0
      %697 = vmatprep.subr.mxu0 0.0
      %698 = vmatpush1.xpose.msra.mxu0 0.0
      %699 = vmatprep.subr.mxu0 0.0
      %700 = vmatpush1.xpose.msra.mxu0 0.0
      %701 = vmatprep.subr.mxu0 0.0
      %702 = vmatpush1.xpose.msra.mxu0 0.0
      %703 = vmatprep.subr.mxu0 0.0
      %704 = vmatpush1.xpose.msra.mxu0 0.0
      %705 = vmatprep.subr.mxu0 0.0
      %706 = vmatpush1.xpose.msra.mxu0 0.0
      %707 = vmatprep.subr.mxu0 0.0
      %708 = vmatpush1.xpose.msra.mxu0 0.0
      %709 = vmatprep.subr.mxu0 0.0
      %710 = vmatpush1.xpose.msra.mxu0 0.0
      %711 = vmatprep.subr.mxu0 0.0
      %712 = vmatpush1.xpose.msra.mxu0 0.0
      %713 = vmatprep.subr.mxu0 0.0
      %714 = vmatpush1.xpose.msra.mxu0 0.0
      %715 = vmatprep.subr.mxu0 0.0
      %716 = vmatpush1.xpose.msra.mxu0 0.0
      %717 = vmatprep.subr.mxu0 0.0
      %718 = vmatpush1.xpose.msra.mxu0 0.0
      %719 = vmatprep.subr.mxu0 0.0
      %720 = vmatpush1.xpose.msra.mxu0 0.0
      %721 = vmatprep.subr.mxu0 0.0
      %722 = vmatpush1.xpose.msra.mxu0 %v689
      %723 = vmatprep.subr.mxu0 0.0
      %724 = vmatpush2.xpose.msra.mxu0 0.0
      %725 = vmatprep.subr.mxu0 0.0
      %726 = vmatpush2.xpose.msra.mxu0 0.0
      %727 = vmatprep.subr.mxu0 0.0
      %728 = vmatpush2.xpose.msra.mxu0 0.0
      %729 = vmatprep.subr.mxu0 0.0
      %730 = vmatpush2.xpose.msra.mxu0 0.0
      %731 = vmatprep.subr.mxu0 0.0
      %732 = vmatpush2.xpose.msra.mxu0 0.0
      %733 = vmatprep.subr.mxu0 0.0
      %734 = vmatpush2.xpose.msra.mxu0 0.0
      %735 = vmatprep.subr.mxu0 0.0
      %736 = vmatpush2.xpose.msra.mxu0 0.0
      %737 = vmatprep.subr.mxu0 0.0
      %738 = vmatpush2.xpose.msra.mxu0 0.0
      %739 = vmatprep.subr.mxu0 0.0
      %740 = vmatpush2.xpose.msra.mxu0 0.0
      %741 = vmatprep.subr.mxu0 0.0
      %742 = vmatpush2.xpose.msra.mxu0 0.0
      %743 = vmatprep.subr.mxu0 0.0
      %744 = vmatpush2.xpose.msra.mxu0 0.0
      %745 = vmatprep.subr.mxu0 0.0
      %746 = vmatpush2.xpose.msra.mxu0 0.0
      %747 = vmatprep.subr.mxu0 0.0
      %748 = vmatpush2.xpose.msra.mxu0 0.0
      %749 = vmatprep.subr.mxu0 0.0
      %750 = vmatpush2.xpose.msra.mxu0 0.0
      %751 = vmatprep.subr.mxu0 0.0
      %752 = vmatpush2.xpose.msra.mxu0 0.0
      %753 = vmatprep.subr.mxu0 0.0
      %754 = vmatpush2.xpose.msra.mxu0 0.0
      %755 = vmatprep.mubr.f32.mxu0 0.0
      %756 = vmatmul.mubr.f32.gmra.mxu0 %v528
      %v757 = vpop.f32.mrf.mxu0
      %v758 = vadd.f32 0.0, %v757
      %v759 = vpop.f32.mrf.mxu0
      %760 = vdwg.mxu0
      %s761 = scalar_lea.vmem %s316, 16
      %v762 = vld [vmem:[%s761] sm:$0x7f]
      %v763 = vadd.f32 %v762, %v758
      %764 = vst.msk [vmem:[%s761] sm:$0x7f] %vm605, %v763
      %vm765 = vcmp.eq.f32.partialorder %v436, 3.0
      %v766 = vsel %vm765, 1.0, 0.0
      %v768 = vsel %vm445, %v766, 0
      %770 = vmatprep.subr.mxu0 0.0
      %771 = vmatpush1.xpose.msra.mxu0 0.0
      %772 = vmatprep.subr.mxu0 0.0
      %773 = vmatpush1.xpose.msra.mxu0 0.0
      %774 = vmatprep.subr.mxu0 0.0
      %775 = vmatpush1.xpose.msra.mxu0 0.0
      %776 = vmatprep.subr.mxu0 0.0
      %777 = vmatpush1.xpose.msra.mxu0 0.0
      %778 = vmatprep.subr.mxu0 0.0
      %779 = vmatpush1.xpose.msra.mxu0 0.0
      %780 = vmatprep.subr.mxu0 0.0
      %781 = vmatpush1.xpose.msra.mxu0 0.0
      %782 = vmatprep.subr.mxu0 0.0
      %783 = vmatpush1.xpose.msra.mxu0 0.0
      %784 = vmatprep.subr.mxu0 0.0
      %785 = vmatpush1.xpose.msra.mxu0 0.0
      %786 = vmatprep.subr.mxu0 0.0
      %787 = vmatpush1.xpose.msra.mxu0 0.0
      %788 = vmatprep.subr.mxu0 0.0
      %789 = vmatpush1.xpose.msra.mxu0 0.0
      %790 = vmatprep.subr.mxu0 0.0
      %791 = vmatpush1.xpose.msra.mxu0 0.0
      %792 = vmatprep.subr.mxu0 0.0
      %793 = vmatpush1.xpose.msra.mxu0 0.0
      %794 = vmatprep.subr.mxu0 0.0
      %795 = vmatpush1.xpose.msra.mxu0 0.0
      %796 = vmatprep.subr.mxu0 0.0
      %797 = vmatpush1.xpose.msra.mxu0 0.0
      %798 = vmatprep.subr.mxu0 0.0
      %799 = vmatpush1.xpose.msra.mxu0 0.0
      %800 = vmatprep.subr.mxu0 0.0
      %801 = vmatpush1.xpose.msra.mxu0 %v768
      %802 = vmatprep.subr.mxu0 0.0
      %803 = vmatpush2.xpose.msra.mxu0 0.0
      %804 = vmatprep.subr.mxu0 0.0
      %805 = vmatpush2.xpose.msra.mxu0 0.0
      %806 = vmatprep.subr.mxu0 0.0
      %807 = vmatpush2.xpose.msra.mxu0 0.0
      %808 = vmatprep.subr.mxu0 0.0
      %809 = vmatpush2.xpose.msra.mxu0 0.0
      %810 = vmatprep.subr.mxu0 0.0
      %811 = vmatpush2.xpose.msra.mxu0 0.0
      %812 = vmatprep.subr.mxu0 0.0
      %813 = vmatpush2.xpose.msra.mxu0 0.0
      %814 = vmatprep.subr.mxu0 0.0
      %815 = vmatpush2.xpose.msra.mxu0 0.0
      %816 = vmatprep.subr.mxu0 0.0
      %817 = vmatpush2.xpose.msra.mxu0 0.0
      %818 = vmatprep.subr.mxu0 0.0
      %819 = vmatpush2.xpose.msra.mxu0 0.0
      %820 = vmatprep.subr.mxu0 0.0
      %821 = vmatpush2.xpose.msra.mxu0 0.0
      %822 = vmatprep.subr.mxu0 0.0
      %823 = vmatpush2.xpose.msra.mxu0 0.0
      %824 = vmatprep.subr.mxu0 0.0
      %825 = vmatpush2.xpose.msra.mxu0 0.0
      %826 = vmatprep.subr.mxu0 0.0
      %827 = vmatpush2.xpose.msra.mxu0 0.0
      %828 = vmatprep.subr.mxu0 0.0
      %829 = vmatpush2.xpose.msra.mxu0 0.0
      %830 = vmatprep.subr.mxu0 0.0
      %831 = vmatpush2.xpose.msra.mxu0 0.0
      %832 = vmatprep.subr.mxu0 0.0
      %833 = vmatpush2.xpose.msra.mxu0 0.0
      %834 = vmatprep.mubr.f32.mxu0 0.0
      %835 = vmatmul.mubr.f32.gmra.mxu0 %v528
      %v836 = vpop.f32.mrf.mxu0
      %v837 = vadd.f32 0.0, %v836
      %v838 = vpop.f32.mrf.mxu0
      %839 = vdwg.mxu0
      %s840 = scalar_lea.vmem %s316, 24
      %v841 = vld [vmem:[%s840] sm:$0x7f]
      %v842 = vadd.f32 %v841, %v837
      %843 = vst.msk [vmem:[%s840] sm:$0x7f] %vm605, %v842
      // Predicated region
      $region41: #{tpu_custom_call.1} parent=35 // pred_check
        %p844 = pneg %p317
      $region42: #{tpu_custom_call.1} parent=35 // pred_check_branch
        %846 = sbr.rel (%p844) target = $region44
      $region43: #{tpu_custom_call.1} parent=35 // pred_region
        %v847 = vld [vmem:[%s294] sm:$0x7]
        %v848 = vlaneseq
        %v849 = vshrl.u32 %v848, 7
        %vm850 = vcmp.eq.s32.totalorder %v849, 0
        %v851 = vlaneseq
        %v852 = vshrl.u32 %v851, 7
        %v853 = vsub.s32 0, %v852
        %v854 = vrot.slane %v847, %v853
        %v855 = vsel %vm850, %v854, 0.0
        %v856 = vadd.f32 %v855, 0.0
        %vm857 = vcmp.eq.s32.totalorder %v849, 1
        %v858 = vlaneseq
        %v859 = vshrl.u32 %v858, 7
        %v860 = vsub.s32 1, %v859
        %v861 = vrot.slane %v847, %v860
        %v862 = vsel %vm857, %v861, 0.0
        %v863 = vadd.f32 %v856, %v862
        %vm864 = vcmp.eq.s32.totalorder %v849, 2
        %v865 = vlaneseq
        %v866 = vshrl.u32 %v865, 7
        %v867 = vsub.s32 2, %v866
        %v868 = vrot.slane %v847, %v867
        %v869 = vsel %vm864, %v868, 0.0
        %v870 = vadd.f32 %v863, %v869
        %v871 = vld [vmem:[#allocation3] sm:$0x1]
        %v872 = vld [vmem:[%s316] sm:$0x7f]
        %v873 = vld [vmem:[#allocation4] sm:$0x7f]
        %875 = vset.pattern.permute.xlu0 0
        %876 = vperm.xlu0 %875, %v873
        %v877 = vpop.permute.xlu0 %876
        %vm879 = vcmp.gt.f32.partialorder %v871, 0.0
        %v880 = vsel %vm879, 1, 0
        %v881 = vlaneseq
        %v882 = vshrl.u32 %v881, 7
        %v883 = vsub.s32 0, %v882
        %v884 = vrot.slane %v880, %v883
        %vm885 = vcmp.eq.s32.totalorder %v884, 1
        %v886 = vsel %vm885, %v872, %v877
        %v887 = vsub.f32 %v886, %v870
        %888 = vst.msk [vmem:[%s316] sm:$0x7f] %vm605, %v887
        %v889 = vld [vmem:[%s682] sm:$0x7f]
        %v890 = vsub.f32 %v889, %v870
        %vm891 = vcmp.gt.f32.partialorder %v871, 1.0
        %v892 = vsel %vm891, 1, 0
        %v893 = vlaneseq
        %v894 = vshrl.u32 %v893, 7
        %v895 = vsub.s32 0, %v894
        %v896 = vrot.slane %v892, %v895
        %vm897 = vcmp.eq.s32.totalorder %v896, 1
        %v898 = vsel %vm897, %v890, %v887
        %899 = vst.msk [vmem:[%s682] sm:$0x7f] %vm605, %v898
        %v900 = vld [vmem:[%s761] sm:$0x7f]
        %v901 = vsub.f32 %v900, %v870
        %vm902 = vcmp.gt.f32.partialorder %v871, 2.0
        %v903 = vsel %vm902, 1, 0
        %v904 = vlaneseq
        %v905 = vshrl.u32 %v904, 7
        %v906 = vsub.s32 0, %v905
        %v907 = vrot.slane %v903, %v906
        %vm908 = vcmp.eq.s32.totalorder %v907, 1
        %v909 = vsel %vm908, %v901, %v887
        %910 = vst.msk [vmem:[%s761] sm:$0x7f] %vm605, %v909
        %v911 = vld [vmem:[%s840] sm:$0x7f]
        %v912 = vsub.f32 %v911, %v870
        %vm913 = vcmp.gt.f32.partialorder %v871, 3.0
        %v914 = vsel %vm913, 1, 0
        %v915 = vlaneseq
        %v916 = vshrl.u32 %v915, 7
        %v917 = vsub.s32 0, %v916
        %v918 = vrot.slane %v914, %v917
        %vm919 = vcmp.eq.s32.totalorder %v918, 1
        %v920 = vsel %vm919, %v912, %v887
        %921 = vst.msk [vmem:[%s840] sm:$0x7f] %vm605, %v920
      $region44: #{tpu_custom_call.1} parent=35 // pred_fallthru
        _
      %p922 = scmp.lt.s32.totalorder %s20, 1
      %s923 = scalar_select %p922, %s20, 1
      %p924 = scmp.lt.s32.totalorder %s21, 0
      %s925 = scalar_select %p924, %s21, 0
      %s926 = smul.addr %s923, 4
      %s927 = sadd.s32 %s925, %s926
      %s928 = smul.addr %s927, 8
      %s929 = scalar_lea.vmem %s4, %s928
      // Predicated region
      $region45: #{tpu_custom_call.1} parent=35 // pred_check
        %p930 = pneg %p166
      $region46: #{tpu_custom_call.1} parent=35 // pred_check_branch
        %932 = sbr.rel (%p930) target = $region48
      $region47: #{tpu_custom_call.1} parent=35 // pred_region
        _
      $region48: #{tpu_custom_call.1} parent=35 // pred_fallthru
        _
    $region36: #{tpu_custom_call.1} parent=5 // pred_fallthru
      _
    %p933 = scmp.le.s32.totalorder 2, %s10
    // Predicated region
    $region49: #{tpu_custom_call.1} parent=5 // pred_check
      %p934 = pneg %p933
    $region50: #{tpu_custom_call.1} parent=5 // pred_check_branch
      %936 = sbr.rel (%p934) target = $region52
    $region51: #{tpu_custom_call.1} parent=5 // pred_region
      %s937 = ssub.s32 %s10, 2
      // Predicated region
      $region53: #{tpu_custom_call.1} parent=51 // pred_check
        %p938 = pneg %p172
      $region54: #{tpu_custom_call.1} parent=51 // pred_check_branch
        %940 = sbr.rel (%p938) target = $region56
      $region55: #{tpu_custom_call.1} parent=51 // pred_region
        %p941 = scmp.lt.s32.totalorder %s23, 1
        %s942 = scalar_select %p941, %s23, 1
        %p943 = scmp.lt.s32.totalorder %s24, 0
        %s944 = scalar_select %p943, %s24, 0
        %s945 = smul.addr %s942, 4
        %s946 = sadd.s32 %s944, %s945
        %s947 = smul.addr %s946, 8
        %s948 = scalar_lea.vmem %s4, %s947
      $region56: #{tpu_custom_call.1} parent=51 // pred_fallthru
        _
    $region52: #{tpu_custom_call.1} parent=5 // pred_fallthru
      _
  $region6: #{tpu_custom_call.1} parent=0 // loop_footer
    %s14 = sadd.s32 1, %s10
  $region7: #{tpu_custom_call.1} parent=0 // loop_footer_branch
    %9 = sbr.rel target = $region3
  $region8: #{tpu_custom_call.1} parent=0 // loop_exit
    _

</llo_original>
